<compile_context>
chip_gen: v7x
topology: tpu7x:2x2x1
jax: 0.10.0
libtpu: 0.0.40
codegen_flags: <defaults>
</compile_context>

<pallas_src>
import functools

import jax
import jax.numpy as jnp
from jax import lax
from jax.experimental import pallas as pl
from jax.experimental.pallas import tpu as pltpu


# ------------------------------------------------------------------ shared in-kernel helper
def _new_vertex_selector(T_ref, taus_ref, g, Bb, V, TAU, N, mm_dtype):
    """One-hot [Bb*TAU, N] selecting each row's new-vertex node slots (rides the MXU)."""
    orow = lax.broadcasted_iota(jnp.int32, (Bb * TAU, 1), 0)
    tgt = jnp.zeros((Bb * TAU, 1), jnp.int32)
    ok = jnp.zeros((Bb * TAU, 1), jnp.bool_)
    for bl in range(Bb):
        b = g * Bb + bl
        t_loc = orow - bl * TAU
        in_o = (t_loc >= 0) & (t_loc < TAU)
        tgt = jnp.where(in_o, bl * V + T_ref[b] + t_loc, tgt)
        ok = ok | (in_o & (t_loc < taus_ref[b]))
    cido = lax.broadcasted_iota(jnp.int32, (Bb * TAU, N), 1)
    return ((cido == tgt) & ok).astype(mm_dtype)


# ------------------------------------------------------------------ kernel: V < 128 path
def _nav_gcm_kernel_blockdiag(r2, V, TAU, Bb, mm_dtype,
                              T_ref, taus_ref, feat_ref, posN_ref, posT_ref,
                              w_ref, b_ref, out_ref):
    """Block-diagonal [N, N] adjacency; one grid step == Bb batch rows.

    T_ref, taus_ref : SMEM int32 [B]            (scalar-prefetched)
    feat_ref        : VMEM [N, F_in]             flattened node features (N = Bb*V)
    posN_ref        : VMEM [N, Dp]               positions, natural layout
    posT_ref        : VMEM [1, Dp, N]            positions, lane-major (pre-transposed)
    w_ref           : VMEM [F_in, 2*Hp]          concat(W_self, W_nbr), H padded to Hp=128
    b_ref           : VMEM [1, Hp]
    out_ref         : VMEM [Bb*TAU, Hp]
    """
    g = pl.program_id(0)
    N = Bb * V
    Hp = out_ref.shape[-1]
    Dp = posN_ref.shape[-1]

    feat = feat_ref[...]                                   # [N, F_in]
    posN = posN_ref[...]                                   # [N, Dp]
    posT = posT_ref[0]                                     # [Dp, N]

    # ---- pairwise squared distances, exact, on the VPU (first term initializes d2) ----
    diff = posN[:, 0:1] - posT[0:1, :]
    d2 = diff * diff
    for d in range(1, Dp):
        diff = posN[:, d:d + 1] - posT[d:d + 1, :]
        d2 = d2 + diff * diff                              # [N, N]

    # ---- causal same-row radius edges as a block-diagonal dense adjacency ----
    # The reference's "target slot valid" term is dropped: rows it prunes are never
    # gathered by `sel`, and causal sources (j < gathered i) are always valid vertices.
    ridx = lax.broadcasted_iota(jnp.int32, (N, 1), 0)
    cidx = lax.broadcasted_iota(jnp.int32, (1, N), 1)
    if (V & (V - 1)) == 0:
        base_row = ridx & (~(V - 1))                       # power-of-two fast path
    else:
        base_row = (ridx // V) * V
    adj = ((d2 <= r2) & (cidx < ridx) & (cidx >= base_row)).astype(mm_dtype)
    # TODO(synk): radius_graph's max_num_neighbors=k truncation is not replicated.

    # ---- GraphConv node update: fused projection matmul + one aggregation matmul ----
    fw = jnp.dot(feat, w_ref[...], preferred_element_type=jnp.float32)     # [N, 2Hp]
    agg = jnp.dot(adj, fw[:, Hp:].astype(mm_dtype),
                  preferred_element_type=jnp.float32)                      # [N, Hp]
    h = jnp.maximum(fw[:, :Hp] + agg + b_ref[...], 0.0)                    # [N, Hp]

    # ---- output[new rows] via one-hot selection matmul ----
    sel = _new_vertex_selector(T_ref, taus_ref, g, Bb, V, TAU, N, mm_dtype)
    out_ref[...] = jnp.dot(sel, h.astype(mm_dtype), preferred_element_type=jnp.float32)


# ------------------------------------------------------------------ kernel: V >= 128 path
def _nav_gcm_kernel_batched(r2, V, TAU, Bb, mm_dtype,
                            T_ref, taus_ref, feat_ref, posN_ref, posT_ref,
                            w_ref, b_ref, out_ref):
    """Per-batch-row [Bb, V, V] adjacency + batched aggregation (no Bb-fold zero waste).

    feat_ref : VMEM [N, F_in]          (flat, so the projection matmul gets full M = N)
    posN_ref : VMEM [1, Bb, V, Dp]     positions, natural layout
    posT_ref : VMEM [1, Bb, Dp, V]     positions, lane-major per row
    """
    g = pl.program_id(0)
    N = Bb * V
    Hp = out_ref.shape[-1]
    Dp = posN_ref.shape[-1]

    feat = feat_ref[...]                                   # [N, F_in]
    posN = posN_ref[0]                                     # [Bb, V, Dp]
    posT = posT_ref[0]                                     # [Bb, Dp, V]

    diff = posN[:, :, 0:1] - posT[:, 0:1, :]
    d2 = diff * diff
    for d in range(1, Dp):
        diff = posN[:, :, d:d + 1] - posT[:, d:d + 1, :]
        d2 = d2 + diff * diff                              # [Bb, V, V]

    ridx3 = lax.broadcasted_iota(jnp.int32, (1, V, 1), 1)
    cidx3 = lax.broadcasted_iota(jnp.int32, (1, 1, V), 2)
    adj = ((d2 <= r2) & (cidx3 < ridx3)).astype(mm_dtype)  # [Bb, V, V]  (causal, same row)
    # TODO(synk): radius_graph's max_num_neighbors=k truncation is not replicated.

    fw = jnp.dot(feat, w_ref[...], preferred_element_type=jnp.float32)     # [N, 2Hp]
    fw3 = fw.reshape(Bb, V, 2 * Hp)
    agg = jnp.einsum('bij,bjh->bih', adj, fw3[:, :, Hp:].astype(mm_dtype),
                     preferred_element_type=jnp.float32)                   # [Bb, V, Hp]
    h3 = jnp.maximum(fw3[:, :, :Hp] + agg + b_ref[...].reshape(1, 1, Hp), 0.0)
    h = h3.reshape(N, Hp)

    sel = _new_vertex_selector(T_ref, taus_ref, g, Bb, V, TAU, N, mm_dtype)
    out_ref[...] = jnp.dot(sel, h.astype(mm_dtype), preferred_element_type=jnp.float32)


# ------------------------------------------------------------------ wrapper helpers
def _choose_rows_per_step(B, V, target_n=512, max_n=1024):
    """Batch rows per grid step: target N = Bb*V in 128..512 (MXU M-fill, amortizes the
    ~0.35us/step grid overhead), keep G = B/Bb >= 2 (pipeline overlap + v7x dual-TC
    sharding of the 'parallel' axis), cap Bb*V at ~1024 for v7x's 64 MiB VMEM."""
    best_bb, best_n = 1, V
    for bb in range(1, B + 1):
        if B % bb:
            continue
        g = B // bb
        n = bb * V
        if n > max_n:
            continue
        if B >= 2 and g < 2:
            continue
        better = (n <= target_n and n > best_n) or (best_n > target_n and n < best_n)
        if better:
            best_bb, best_n = bb, n
    return best_bb


def _vmem_limit_bytes(N, nn, F_in, Hp, Bb, TAU, Dp):
    """Scoped-VMEM request: nn-sized intermediates (d2/mask/adj), sel, fw/h working set,
    double-buffered inputs/outputs, weights; 2x headroom; clamped to a portable range."""
    f32 = 4
    est = 4 * nn * f32                                     # d2 + mask chain + adj
    est += Bb * TAU * N * f32                              # sel
    est += N * (4 * Hp) * f32                              # fw + halves/agg/h
    est += 2 * (N * F_in + 2 * N * Dp) * f32               # double-buffered feat/pos
    est += 2 * Bb * TAU * Hp * f32                         # double-buffered out
    est += (F_in * 2 * Hp + Hp) * f32                      # weights + bias
    limit = 2 * est + (8 << 20)
    return int(max(32 << 20, min(limit, 48 << 20)))


# ------------------------------------------------------------------ forward wrapper
def nav_gcm_forward(x, pos, rot, taus, state, params, r=1.0,
                    rows_per_step=None, use_bf16_matmul=False):
    """Pallas implementation of NavGCM.forward (causal=True, edge_method='radius').

    Returns (padded_output [B, tau_max, H], new_state).
    NOTE: the reference uses out_time = taus.max(); for static shapes we use
    out_time = x.shape[1] (tau_max) — identical when max(taus) == tau_max.
    """
    old_x, old_pos, old_rot, T = state
    B, tau_max, _ = x.shape
    V = old_x.shape[1]
    Dp = pos.shape[-1]

    T = T.astype(jnp.int32)
    taus = taus.astype(jnp.int32)

    # ---------------- update(): scatter new observations into the state (XLA glue) ------
    # (state is donated at the jit boundary so this updates in place, no full-state copy)
    t_ar = jnp.arange(tau_max, dtype=jnp.int32)

    def scatter_one(old, new, T_b, tau_b):
        dest = jnp.where(t_ar < tau_b, T_b + t_ar, V)       # invalid -> OOB -> dropped
        return old.at[dest].set(new, mode='drop')

    new_x = jax.vmap(scatter_one)(old_x, x, T, taus)
    new_pos = jax.vmap(scatter_one)(old_pos, pos, T, taus)
    new_rot = jax.vmap(scatter_one)(old_rot, rot, T, taus)
    new_state = (new_x, new_pos, new_rot, T + taus)

    feat = jnp.concatenate([new_x, new_pos, new_rot], axis=-1)   # [B, V, F_in]
    F_in = feat.shape[-1]
    H = params['w_self'].shape[-1]
    Hp = ((H + 127) // 128) * 128                                # lane-dense output width

    # -------- batch rows per grid step (per-generation heuristic, see helper) -----------
    Bb = _choose_rows_per_step(B, V) if rows_per_step is None else rows_per_step
    assert B % Bb == 0, "rows_per_step must divide the batch size"
    G = B // Bb
    N = Bb * V
    if G > 1:
        assert N % 8 == 0 and (Bb * tau_max) % 8 == 0, \
            "Bb*V and Bb*tau_max must be multiples of 8 when the grid has >1 step"

    # fused + lane-padded projection weight [F_in, 2*Hp] = [W_self | 0 | W_nbr | 0]
    w_cat = jnp.zeros((F_in, 2 * Hp), jnp.float32)
    w_cat = w_cat.at[:, :H].set(params['w_self'].astype(jnp.float32))
    w_cat = w_cat.at[:, Hp:Hp + H].set(params['w_nbr'].astype(jnp.float32))
    bias = jnp.zeros((1, Hp), jnp.float32).at[:, :H].set(
        params['bias'].reshape(1, H).astype(jnp.float32))

    feat_flat = feat.reshape(B * V, F_in)                                   # [B*V, F_in]
    mm_dtype = jnp.bfloat16 if use_bf16_matmul else jnp.float32

    # Block-diagonal form only while V < 128 (fills MXU M at small V); per-batch-row
    # batched form otherwise (VMEM/flops scale as Bb*V^2 instead of (Bb*V)^2).
    use_block_diag = (V < 128) or (V % 8 != 0)
    if use_block_diag:
        pos_a = new_pos.reshape(B * V, Dp)
        pos_b = new_pos.reshape(G, Bb, V, Dp).transpose(0, 3, 1, 2).reshape(G, Dp, N)
        kernel = functools.partial(_nav_gcm_kernel_blockdiag,
                                   float(r) * float(r), V, tau_max, Bb, mm_dtype)
        posN_spec = pl.BlockSpec((N, Dp), lambda g, T_s, tau_s: (g, 0))
        posT_spec = pl.BlockSpec((1, Dp, N), lambda g, T_s, tau_s: (g, 0, 0))
        nn = N * N
    else:
        pos_a = new_pos.reshape(G, Bb, V, Dp)
        pos_b = new_pos.reshape(G, Bb, V, Dp).transpose(0, 1, 3, 2)         # [G,Bb,Dp,V]
        kernel = functools.partial(_nav_gcm_kernel_batched,
                                   float(r) * float(r), V, tau_max, Bb, mm_dtype)
        posN_spec = pl.BlockSpec((1, Bb, V, Dp), lambda g, T_s, tau_s: (g, 0, 0, 0))
        posT_spec = pl.BlockSpec((1, Bb, Dp, V), lambda g, T_s, tau_s: (g, 0, 0, 0))
        nn = Bb * V * V

    out_flat = pl.pallas_call(
        kernel,
        out_shape=jax.ShapeDtypeStruct((B * tau_max, Hp), jnp.float32),
        grid_spec=pltpu.PrefetchScalarGridSpec(
            num_scalar_prefetch=2,
            grid=(G,),
            in_specs=[
                pl.BlockSpec((N, F_in), lambda g, T_s, tau_s: (g, 0)),
                posN_spec,
                posT_spec,
                pl.BlockSpec((F_in, 2 * Hp), lambda g, T_s, tau_s: (0, 0)),
                pl.BlockSpec((1, Hp), lambda g, T_s, tau_s: (0, 0)),
            ],
            out_specs=pl.BlockSpec((Bb * tau_max, Hp), lambda g, T_s, tau_s: (g, 0)),
        ),
        compiler_params=pltpu.CompilerParams(
            dimension_semantics=("parallel",),
            vmem_limit_bytes=_vmem_limit_bytes(N, nn, F_in, Hp, Bb, tau_max, Dp)),
    )(T, taus, feat_flat, pos_a, pos_b, w_cat, bias)

    padded_output = out_flat.reshape(B, tau_max, Hp)[..., :H]
    return padded_output, new_state


# ------------------------------------------------------------------ pure-JAX reference
def nav_gcm_reference(feat, new_pos, T, taus, params, r, tau_max):
    """Pure-JAX dense reference of the in-kernel math (for validation)."""
    B, V, _ = feat.shape
    diff = new_pos[:, :, None, :] - new_pos[:, None, :, :]
    d2 = jnp.sum(diff * diff, axis=-1)                                   # [B, V, V]
    idx = jnp.arange(V)
    n_valid = (T + taus)[:, None, None]
    adj = ((d2 <= r * r)
           & (idx[None, None, :] < idx[None, :, None])                   # causal j < i
           & (idx[None, :, None] < n_valid)).astype(jnp.float32)         # target valid
    fw_nbr = feat @ params['w_nbr']
    agg = jnp.einsum('bvw,bwh->bvh', adj, fw_nbr)
    h = jnp.maximum(feat @ params['w_self'] + agg + params['bias'], 0.0)
    t_ar = jnp.arange(tau_max)
    gather = jnp.clip(T[:, None] + t_ar[None, :], 0, V - 1)
    out = jnp.take_along_axis(h, gather[:, :, None], axis=1)
    mask = (t_ar[None, :] < taus[:, None]).astype(jnp.float32)[:, :, None]
    return out * mask


# ------------------------------------------------------------------ test harness
def _run_case(seed, B, tau_max, F, Dp, Dr, V, H, r, T_list, tau_list, use_bf16, tol):
    key = jax.random.fold_in(jax.random.PRNGKey(0), seed)
    ks = jax.random.split(key, 9)
    x = jax.random.normal(ks[0], (B, tau_max, F), jnp.float32)
    pos = jax.random.uniform(ks[1], (B, tau_max, Dp), jnp.float32, 0.0, 2.0)
    rot = jax.random.uniform(ks[2], (B, tau_max, Dr), jnp.float32, -3.14, 3.14)
    taus = jnp.array(tau_list, jnp.int32)
    T = jnp.array(T_list, jnp.int32)

    old_x = jax.random.normal(ks[3], (B, V, F), jnp.float32)
    old_pos = jax.random.uniform(ks[4], (B, V, Dp), jnp.float32, 0.0, 2.0)
    old_rot = jax.random.uniform(ks[5], (B, V, Dr), jnp.float32, -3.14, 3.14)
    state = (old_x, old_pos, old_rot, T)

    F_in = F + Dp + Dr
    params = {
        'w_self': jax.random.normal(ks[6], (F_in, H), jnp.float32) * 0.1,
        'w_nbr': jax.random.normal(ks[7], (F_in, H), jnp.float32) * 0.1,
        'bias': jax.random.normal(ks[8], (1, H), jnp.float32) * 0.01,
    }

    fwd = jax.jit(functools.partial(nav_gcm_forward, r=r, use_bf16_matmul=use_bf16),
                  donate_argnums=(4,))
    out, new_state = fwd(x, pos, rot, taus, state, params)
    jax.block_until_ready(out)

    # validate against pure-JAX dense reference (old state was donated; rebuild T)
    new_x, new_pos, new_rot, new_T = new_state
    T_ref_val = new_T - taus
    feat = jnp.concatenate([new_x, new_pos, new_rot], axis=-1)
    ref = nav_gcm_reference(feat, new_pos, T_ref_val, taus, params, r, tau_max)
    assert out.shape == (B, tau_max, H)
    assert jnp.allclose(out, ref, rtol=tol, atol=tol), "mismatch vs reference"


if __name__ == "__main__":
    # Config 1: small V -> block-diagonal path (Bb=4, G=2, N=128, lane-dense Hp=128).
    _run_case(seed=0, B=8, tau_max=8, F=24, Dp=3, Dr=1, V=32, H=32, r=1.0,
              T_list=[4, 10, 0, 16, 24, 7, 3, 20],
              tau_list=[8, 5, 8, 3, 8, 6, 2, 8],
              use_bf16=False, tol=1e-4)
    # Config 2: V >= 128 -> per-batch-row batched-adjacency path (Bb=2, G=2, N=256).
    _run_case(seed=1, B=4, tau_max=8, F=24, Dp=3, Dr=1, V=128, H=32, r=1.0,
              T_list=[4, 50, 100, 0],
              tau_list=[8, 5, 8, 3],
              use_bf16=False, tol=5e-4)
    print("KERNEL_OK")
</pallas_src>

<mosaic_0001>
module attributes {stable_mosaic.version = 11 : i64} {
  func.func @_nav_gcm_kernel_blockdiag(%arg0: i32, %arg1: memref<8xi32, #tpu.memory_space<smem>>, %arg2: memref<8xi32, #tpu.memory_space<smem>>, %arg3: memref<128x28xf32, #tpu.memory_space<vmem>>, %arg4: memref<128x3xf32, #tpu.memory_space<vmem>>, %arg5: memref<1x3x128xf32, #tpu.memory_space<vmem>>, %arg6: memref<28x256xf32, #tpu.memory_space<vmem>>, %arg7: memref<1x128xf32, #tpu.memory_space<vmem>>, %arg8: memref<32x128xf32, #tpu.memory_space<vmem>>) attributes {dimension_semantics = [#tpu.dimension_semantics<parallel>], iteration_bounds = array<i64: 2>, scalar_prefetch = 2 : i64, scratch_operands = 0 : i64, tpu.core_type = #tpu.core_type<tc>, window_params = [{transform_indices = @transform_0, window_bounds = array<i64: 128, 28>}, {transform_indices = @transform_1, window_bounds = array<i64: 128, 3>}, {transform_indices = @transform_2, window_bounds = array<i64: 1, 3, 128>}, {pipeline_mode = #tpu.pipeline_mode<synchronous>, transform_indices = @transform_3, window_bounds = array<i64: 28, 256>}, {pipeline_mode = #tpu.pipeline_mode<synchronous>, transform_indices = @transform_4, window_bounds = array<i64: 1, 128>}, {transform_indices = @transform_5, window_bounds = array<i64: 32, 128>}]} {
    %c0 = arith.constant 0 : index
    %c0_0 = arith.constant 0 : index
    %0 = vector.load %arg3[%c0, %c0_0] : memref<128x28xf32, #tpu.memory_space<vmem>>, vector<128x28xf32>
    %c0_1 = arith.constant 0 : index
    %c0_2 = arith.constant 0 : index
    %1 = vector.load %arg4[%c0_1, %c0_2] : memref<128x3xf32, #tpu.memory_space<vmem>>, vector<128x3xf32>
    %c0_3 = arith.constant 0 : index
    %c0_4 = arith.constant 0 : index
    %c0_5 = arith.constant 0 : index
    %2 = vector.load %arg5[%c0_3, %c0_4, %c0_5] : memref<1x3x128xf32, #tpu.memory_space<vmem>>, vector<1x3x128xf32>
    %3 = vector.shape_cast %2 : vector<1x3x128xf32> to vector<3x128xf32>
    %4 = vector.extract_strided_slice %1 {offsets = [0, 0], sizes = [128, 1], strides = [1, 1]} : vector<128x3xf32> to vector<128x1xf32>
    %5 = vector.extract_strided_slice %3 {offsets = [0, 0], sizes = [1, 128], strides = [1, 1]} : vector<3x128xf32> to vector<1x128xf32>
    %6 = vector.broadcast %4 : vector<128x1xf32> to vector<128x128xf32>
    %7 = vector.broadcast %5 : vector<1x128xf32> to vector<128x128xf32>
    %8 = arith.subf %6, %7 : vector<128x128xf32>
    %9 = arith.mulf %8, %8 : vector<128x128xf32>
    %10 = vector.extract_strided_slice %1 {offsets = [0, 1], sizes = [128, 1], strides = [1, 1]} : vector<128x3xf32> to vector<128x1xf32>
    %11 = vector.extract_strided_slice %3 {offsets = [1, 0], sizes = [1, 128], strides = [1, 1]} : vector<3x128xf32> to vector<1x128xf32>
    %12 = vector.broadcast %10 : vector<128x1xf32> to vector<128x128xf32>
    %13 = vector.broadcast %11 : vector<1x128xf32> to vector<128x128xf32>
    %14 = arith.subf %12, %13 : vector<128x128xf32>
    %15 = arith.mulf %14, %14 : vector<128x128xf32>
    %16 = arith.addf %9, %15 : vector<128x128xf32>
    %17 = vector.extract_strided_slice %1 {offsets = [0, 2], sizes = [128, 1], strides = [1, 1]} : vector<128x3xf32> to vector<128x1xf32>
    %18 = vector.extract_strided_slice %3 {offsets = [2, 0], sizes = [1, 128], strides = [1, 1]} : vector<3x128xf32> to vector<1x128xf32>
    %19 = vector.broadcast %17 : vector<128x1xf32> to vector<128x128xf32>
    %20 = vector.broadcast %18 : vector<1x128xf32> to vector<128x128xf32>
    %21 = arith.subf %19, %20 : vector<128x128xf32>
    %22 = arith.mulf %21, %21 : vector<128x128xf32>
    %23 = arith.addf %16, %22 : vector<128x128xf32>
    %24 = tpu.iota {dimensions = array<i32: 0>} : vector<128x1xi32>
    %25 = tpu.iota {dimensions = array<i32: 1>} : vector<1x128xi32>
    %c-32_i32 = arith.constant -32 : i32
    %26 = vector.broadcast %c-32_i32 : i32 to vector<128x1xi32>
    %27 = arith.andi %24, %26 : vector<128x1xi32>
    %cst = arith.constant 1.000000e+00 : f32
    %28 = vector.broadcast %cst : f32 to vector<128x128xf32>
    %29 = arith.cmpf ole, %23, %28 : vector<128x128xf32>
    %30 = vector.broadcast %25 : vector<1x128xi32> to vector<128x128xi32>
    %31 = vector.broadcast %24 : vector<128x1xi32> to vector<128x128xi32>
    %32 = arith.cmpi slt, %30, %31 : vector<128x128xi32>
    %33 = arith.andi %29, %32 : vector<128x128xi1>
    %34 = vector.broadcast %25 : vector<1x128xi32> to vector<128x128xi32>
    %35 = vector.broadcast %27 : vector<128x1xi32> to vector<128x128xi32>
    %36 = arith.cmpi sge, %34, %35 : vector<128x128xi32>
    %37 = arith.andi %33, %36 : vector<128x128xi1>
    %38 = arith.extui %37 : vector<128x128xi1> to vector<128x128xi32>
    %39 = arith.sitofp %38 : vector<128x128xi32> to vector<128x128xf32>
    %c0_6 = arith.constant 0 : index
    %c0_7 = arith.constant 0 : index
    %40 = vector.load %arg6[%c0_6, %c0_7] : memref<28x256xf32, #tpu.memory_space<vmem>>, vector<28x256xf32>
    %cst_8 = arith.constant dense<0.000000e+00> : vector<128x256xf32>
    %41 = tpu.matmul %0, %40, %cst_8 {dimension_numbers = #tpu.dot_dimension_numbers<[1], [0], [0], [1], [0, 0, 1, 1], [], []>} : vector<128x28xf32>, vector<28x256xf32>, vector<128x256xf32> -> vector<128x256xf32>
    %42 = vector.extract_strided_slice %41 {offsets = [0, 128], sizes = [128, 128], strides = [1, 1]} : vector<128x256xf32> to vector<128x128xf32>
    %cst_9 = arith.constant dense<0.000000e+00> : vector<128x128xf32>
    %43 = tpu.matmul %39, %42, %cst_9 {dimension_numbers = #tpu.dot_dimension_numbers<[1], [0], [0], [1], [0, 0, 1, 1], [], []>} : vector<128x128xf32>, vector<128x128xf32>, vector<128x128xf32> -> vector<128x128xf32>
    %44 = vector.extract_strided_slice %41 {offsets = [0, 0], sizes = [128, 128], strides = [1, 1]} : vector<128x256xf32> to vector<128x128xf32>
    %45 = arith.addf %44, %43 : vector<128x128xf32>
    %c0_10 = arith.constant 0 : index
    %c0_11 = arith.constant 0 : index
    %46 = vector.load %arg7[%c0_10, %c0_11] : memref<1x128xf32, #tpu.memory_space<vmem>>, vector<1x128xf32>
    %47 = vector.broadcast %46 : vector<1x128xf32> to vector<128x128xf32>
    %48 = arith.addf %45, %47 : vector<128x128xf32>
    %cst_12 = arith.constant 0.000000e+00 : f32
    %49 = vector.broadcast %cst_12 : f32 to vector<128x128xf32>
    %50 = arith.maximumf %48, %49 : vector<128x128xf32>
    %51 = tpu.iota {dimensions = array<i32: 0>} : vector<32x1xi32>
    %c0_i32 = arith.constant 0 : i32
    %52 = vector.broadcast %c0_i32 : i32 to vector<32x1xi32>
    %false = arith.constant false
    %53 = vector.broadcast %false : i1 to vector<32x1xi1>
    %c4_i32 = arith.constant 4 : i32
    %54 = arith.muli %arg0, %c4_i32 : i32
    %c0_i32_13 = arith.constant 0 : i32
    %55 = arith.addi %54, %c0_i32_13 : i32
    %c0_i32_14 = arith.constant 0 : i32
    %56 = vector.broadcast %c0_i32_14 : i32 to vector<32x1xi32>
    %57 = arith.subi %51, %56 : vector<32x1xi32>
    %c0_i32_15 = arith.constant 0 : i32
    %58 = vector.broadcast %c0_i32_15 : i32 to vector<32x1xi32>
    %59 = arith.cmpi sge, %57, %58 : vector<32x1xi32>
    %c8_i32 = arith.constant 8 : i32
    %60 = vector.broadcast %c8_i32 : i32 to vector<32x1xi32>
    %61 = arith.cmpi slt, %57, %60 : vector<32x1xi32>
    %62 = arith.andi %59, %61 : vector<32x1xi1>
    %63 = arith.index_cast %55 : i32 to index
    %64 = memref.load %arg1[%63] : memref<8xi32, #tpu.memory_space<smem>>
    %c0_i32_16 = arith.constant 0 : i32
    %65 = arith.addi %c0_i32_16, %64 : i32
    %66 = vector.broadcast %65 : i32 to vector<32x1xi32>
    %67 = arith.addi %66, %57 : vector<32x1xi32>
    %68 = arith.select %62, %67, %52 : vector<32x1xi1>, vector<32x1xi32>
    %69 = arith.index_cast %55 : i32 to index
    %70 = memref.load %arg2[%69] : memref<8xi32, #tpu.memory_space<smem>>
    %71 = vector.broadcast %70 : i32 to vector<32x1xi32>
    %72 = arith.cmpi slt, %57, %71 : vector<32x1xi32>
    %73 = arith.andi %62, %72 : vector<32x1xi1>
    %74 = arith.ori %53, %73 : vector<32x1xi1>
    %c4_i32_17 = arith.constant 4 : i32
    %75 = arith.muli %arg0, %c4_i32_17 : i32
    %c1_i32 = arith.constant 1 : i32
    %76 = arith.addi %75, %c1_i32 : i32
    %c8_i32_18 = arith.constant 8 : i32
    %77 = vector.broadcast %c8_i32_18 : i32 to vector<32x1xi32>
    %78 = arith.subi %51, %77 : vector<32x1xi32>
    %c0_i32_19 = arith.constant 0 : i32
    %79 = vector.broadcast %c0_i32_19 : i32 to vector<32x1xi32>
    %80 = arith.cmpi sge, %78, %79 : vector<32x1xi32>
    %c8_i32_20 = arith.constant 8 : i32
    %81 = vector.broadcast %c8_i32_20 : i32 to vector<32x1xi32>
    %82 = arith.cmpi slt, %78, %81 : vector<32x1xi32>
    %83 = arith.andi %80, %82 : vector<32x1xi1>
    %84 = arith.index_cast %76 : i32 to index
    %85 = memref.load %arg1[%84] : memref<8xi32, #tpu.memory_space<smem>>
    %c32_i32 = arith.constant 32 : i32
    %86 = arith.addi %c32_i32, %85 : i32
    %87 = vector.broadcast %86 : i32 to vector<32x1xi32>
    %88 = arith.addi %87, %78 : vector<32x1xi32>
    %89 = arith.select %83, %88, %68 : vector<32x1xi1>, vector<32x1xi32>
    %90 = arith.index_cast %76 : i32 to index
    %91 = memref.load %arg2[%90] : memref<8xi32, #tpu.memory_space<smem>>
    %92 = vector.broadcast %91 : i32 to vector<32x1xi32>
    %93 = arith.cmpi slt, %78, %92 : vector<32x1xi32>
    %94 = arith.andi %83, %93 : vector<32x1xi1>
    %95 = arith.ori %74, %94 : vector<32x1xi1>
    %c4_i32_21 = arith.constant 4 : i32
    %96 = arith.muli %arg0, %c4_i32_21 : i32
    %c2_i32 = arith.constant 2 : i32
    %97 = arith.addi %96, %c2_i32 : i32
    %c16_i32 = arith.constant 16 : i32
    %98 = vector.broadcast %c16_i32 : i32 to vector<32x1xi32>
    %99 = arith.subi %51, %98 : vector<32x1xi32>
    %c0_i32_22 = arith.constant 0 : i32
    %100 = vector.broadcast %c0_i32_22 : i32 to vector<32x1xi32>
    %101 = arith.cmpi sge, %99, %100 : vector<32x1xi32>
    %c8_i32_23 = arith.constant 8 : i32
    %102 = vector.broadcast %c8_i32_23 : i32 to vector<32x1xi32>
    %103 = arith.cmpi slt, %99, %102 : vector<32x1xi32>
    %104 = arith.andi %101, %103 : vector<32x1xi1>
    %105 = arith.index_cast %97 : i32 to index
    %106 = memref.load %arg1[%105] : memref<8xi32, #tpu.memory_space<smem>>
    %c64_i32 = arith.constant 64 : i32
    %107 = arith.addi %c64_i32, %106 : i32
    %108 = vector.broadcast %107 : i32 to vector<32x1xi32>
    %109 = arith.addi %108, %99 : vector<32x1xi32>
    %110 = arith.select %104, %109, %89 : vector<32x1xi1>, vector<32x1xi32>
    %111 = arith.index_cast %97 : i32 to index
    %112 = memref.load %arg2[%111] : memref<8xi32, #tpu.memory_space<smem>>
    %113 = vector.broadcast %112 : i32 to vector<32x1xi32>
    %114 = arith.cmpi slt, %99, %113 : vector<32x1xi32>
    %115 = arith.andi %104, %114 : vector<32x1xi1>
    %116 = arith.ori %95, %115 : vector<32x1xi1>
    %c4_i32_24 = arith.constant 4 : i32
    %117 = arith.muli %arg0, %c4_i32_24 : i32
    %c3_i32 = arith.constant 3 : i32
    %118 = arith.addi %117, %c3_i32 : i32
    %c24_i32 = arith.constant 24 : i32
    %119 = vector.broadcast %c24_i32 : i32 to vector<32x1xi32>
    %120 = arith.subi %51, %119 : vector<32x1xi32>
    %c0_i32_25 = arith.constant 0 : i32
    %121 = vector.broadcast %c0_i32_25 : i32 to vector<32x1xi32>
    %122 = arith.cmpi sge, %120, %121 : vector<32x1xi32>
    %c8_i32_26 = arith.constant 8 : i32
    %123 = vector.broadcast %c8_i32_26 : i32 to vector<32x1xi32>
    %124 = arith.cmpi slt, %120, %123 : vector<32x1xi32>
    %125 = arith.andi %122, %124 : vector<32x1xi1>
    %126 = arith.index_cast %118 : i32 to index
    %127 = memref.load %arg1[%126] : memref<8xi32, #tpu.memory_space<smem>>
    %c96_i32 = arith.constant 96 : i32
    %128 = arith.addi %c96_i32, %127 : i32
    %129 = vector.broadcast %128 : i32 to vector<32x1xi32>
    %130 = arith.addi %129, %120 : vector<32x1xi32>
    %131 = arith.select %125, %130, %110 : vector<32x1xi1>, vector<32x1xi32>
    %132 = arith.index_cast %118 : i32 to index
    %133 = memref.load %arg2[%132] : memref<8xi32, #tpu.memory_space<smem>>
    %134 = vector.broadcast %133 : i32 to vector<32x1xi32>
    %135 = arith.cmpi slt, %120, %134 : vector<32x1xi32>
    %136 = arith.andi %125, %135 : vector<32x1xi1>
    %137 = arith.ori %116, %136 : vector<32x1xi1>
    %138 = tpu.iota {dimensions = array<i32: 1>} : vector<32x128xi32>
    %139 = vector.broadcast %131 : vector<32x1xi32> to vector<32x128xi32>
    %140 = arith.cmpi eq, %138, %139 : vector<32x128xi32>
    %141 = vector.broadcast %137 : vector<32x1xi1> to vector<32x128xi1>
    %142 = arith.andi %140, %141 : vector<32x128xi1>
    %143 = arith.extui %142 : vector<32x128xi1> to vector<32x128xi32>
    %144 = arith.sitofp %143 : vector<32x128xi32> to vector<32x128xf32>
    %cst_27 = arith.constant dense<0.000000e+00> : vector<32x128xf32>
    %145 = tpu.matmul %144, %50, %cst_27 {dimension_numbers = #tpu.dot_dimension_numbers<[1], [0], [0], [1], [0, 0, 1, 1], [], []>} : vector<32x128xf32>, vector<128x128xf32>, vector<32x128xf32> -> vector<32x128xf32>
    %c0_28 = arith.constant 0 : index
    %c0_29 = arith.constant 0 : index
    %146 = vector.load %arg8[%c0_28, %c0_29] : memref<32x128xf32, #tpu.memory_space<vmem>>, vector<32x128xf32>
    tpu.vector_store %arg8[%c0_28, %c0_29], %145 {strides = array<i32>} : memref<32x128xf32, #tpu.memory_space<vmem>>, vector<32x128xf32>,
    return
  }
  func.func @transform_0(%arg0: i32, %arg1: memref<8xi32, #tpu.memory_space<smem>>, %arg2: memref<8xi32, #tpu.memory_space<smem>>) -> (i32, i32) {
    %c0_i32 = arith.constant 0 : i32
    %c0_i32_0 = arith.constant 0 : i32
    return %arg0, %c0_i32 : i32, i32
  }
  func.func @transform_1(%arg0: i32, %arg1: memref<8xi32, #tpu.memory_space<smem>>, %arg2: memref<8xi32, #tpu.memory_space<smem>>) -> (i32, i32) {
    %c0_i32 = arith.constant 0 : i32
    %c0_i32_0 = arith.constant 0 : i32
    return %arg0, %c0_i32 : i32, i32
  }
  func.func @transform_2(%arg0: i32, %arg1: memref<8xi32, #tpu.memory_space<smem>>, %arg2: memref<8xi32, #tpu.memory_space<smem>>) -> (i32, i32, i32) {
    %c0_i32 = arith.constant 0 : i32
    %c0_i32_0 = arith.constant 0 : i32
    %c0_i32_1 = arith.constant 0 : i32
    return %arg0, %c0_i32, %c0_i32_0 : i32, i32, i32
  }
  func.func @transform_3(%arg0: i32, %arg1: memref<8xi32, #tpu.memory_space<smem>>, %arg2: memref<8xi32, #tpu.memory_space<smem>>) -> (i32, i32) {
    %c0_i32 = arith.constant 0 : i32
    %c0_i32_0 = arith.constant 0 : i32
    %c0_i32_1 = arith.constant 0 : i32
    return %c0_i32, %c0_i32_0 : i32, i32
  }
  func.func @transform_4(%arg0: i32, %arg1: memref<8xi32, #tpu.memory_space<smem>>, %arg2: memref<8xi32, #tpu.memory_space<smem>>) -> (i32, i32) {
    %c0_i32 = arith.constant 0 : i32
    %c0_i32_0 = arith.constant 0 : i32
    %c0_i32_1 = arith.constant 0 : i32
    return %c0_i32, %c0_i32_0 : i32, i32
  }
  func.func @transform_5(%arg0: i32, %arg1: memref<8xi32, #tpu.memory_space<smem>>, %arg2: memref<8xi32, #tpu.memory_space<smem>>) -> (i32, i32) {
    %c0_i32 = arith.constant 0 : i32
    %c0_i32_0 = arith.constant 0 : i32
    return %arg0, %c0_i32 : i32, i32
  }
}

</mosaic_0001>

<llo_original>
// kernel: nav_gcm_forward.1
$region0: #{nav_gcm_forward.1}
  #allocation0 [shape = 'u32[]', space=smem, size = 0x4, offset = 0x4, fixed_abs, tag = 'smem constant byte address 0x4 - core index']
  #allocation1 [shape = 'u32[144,128]{1,0:T(1,128)}', space=vmem, size = 0x12000, scoped, tag = 'internal scratch']
  #allocation2 [shape = 's32[1]{0}', space=sflag, size = 0x4, scoped, tag = 'scoped memory for nav_gcm_forward.1']
  #allocation3 [shape = 'u8[512]{0}', space=smem, size = 0x200, scoped, tag = 'prefetched SMEM operand 0']
  #allocation4 [shape = 'u8[512]{0}', space=smem, size = 0x200, scoped, tag = 'prefetched SMEM operand 1']
  %s0 = inlined_call_operand.vmem [shape: s32[8], index: 0, kind: input, shape index: {}]
  %s1 = inlined_call_operand.vmem [shape: s32[8], index: 1, kind: input, shape index: {}]
  %s2 = inlined_call_operand.vmem [shape: f32[256,28], index: 2, kind: input, shape index: {}]
  %s3 = inlined_call_operand.vmem [shape: f32[256,3], index: 3, kind: input, shape index: {}]
  %s4 = inlined_call_operand.vmem [shape: f32[2,3,128], index: 4, kind: input, shape index: {}]
  %s5 = inlined_call_operand.vmem [shape: f32[28,256], index: 5, kind: input, shape index: {}]
  %s6 = inlined_call_operand.vmem [shape: f32[1,128], index: 6, kind: input, shape index: {}]
  %s7 = inlined_call_operand.hbm [shape: f32[64,128], index: 7, kind: output, shape index: {}]
  %s8 = sld [smem:[#allocation0]]
  $region53: #{nav_gcm_forward.1} parent=0
    _
  %s10 = ssub.s32 1, %s8
  %s11 = scalar_select 0, %s10, %s8
  %s12 = sshll.u32 %s0, 4
  %s13 = int_to_ptr.vmem [resolvable:$true] %s12
  %15 = dma.vmem_to_smem %s13, 16, [#allocation3], [#allocation2]
  %s16 = sshll.u32 %s1, 4
  %s17 = int_to_ptr.vmem [resolvable:$true] %s16
  %19 = dma.vmem_to_smem %s17, 16, [#allocation4], [#allocation2]
  %20 = dma.done [#allocation2], 32
  %21 = sfence
  $region1: #{nav_gcm_forward.1} parent=0
    #allocation5 [shape = 'u8[32768]{0}', space=vmem, size = 0x8000, scoped, tag = 'output window, operand 0']
    #allocation6 [shape = 's32[2]{0}', space=sflag, size = 0x8, scoped, tag = 'scoped memory for nav_gcm_forward.1']
    %22 = vsyncpa [#allocation6], 0
    %s23 = scalar_lea.sflag [#allocation6], 1
    %24 = vsyncpa %s23, 0
    loop: start=0, step=1, limit=4
    $region2: #{nav_gcm_forward.1} parent=1 // loop_pre_header
      _
    $region3: #{nav_gcm_forward.1} parent=1 // loop_header
      %s26 = sphi 0, %s30
      %p27 = scmp.ge.s32.totalorder %s26, 4
      %s36 = sphi 0, %s38
      %s39 = sphi 0, %s36
      %s40 = sphi 0, %s39
      %s56 = sphi 0, %s40
      %s62 = sphi 0, %s64
      %s65 = sphi 0, %s62
      %s66 = sphi 0, %s65
      %s82 = sphi 0, %s66
      %s88 = sphi 0, %s90
      %s91 = sphi 0, %s88
      %s92 = sphi 0, %s91
      %s108 = sphi 0, %s92
      %s112 = sphi 0, %s112
      %s114 = sphi 0, %s112
      %s115 = sphi 0, %s114
      %s129 = sphi 0, %s115
      %s133 = sphi 0, %s133
      %s135 = sphi 0, %s133
      %s136 = sphi 0, %s135
      %s150 = sphi 0, %s136
      %s156 = sphi 0, %s158
      %s159 = sphi 0, %s156
      %s160 = sphi 0, %s159
      %s176 = sphi 0, %s160
    $region4: #{nav_gcm_forward.1} parent=1 // loop_header_branch
      %29 = sbr.rel (%p27) target = $region8
    $region5: #{nav_gcm_forward.1} parent=1 // loop_body
      %s31 = ssub.s32 %s26, 1
      %s32 = ssub.s32 %s26, 2
      %s33 = sadd.s32 %s26, 1
      %s34 = ssub.s32 %s26, %s33
      %p35 = scmp.eq.s32.totalorder %s34, 0
      %s37 = sadd.s32 %s36, 1
      %s38 = scalar_select %p35, %s36, %s37
      %p41 = pneg %p35
      %p42 = scmp.eq.s32.totalorder %s26, 1
      %p43 = por %p41, %p42
      %p44 = scmp.ne.s32.totalorder %s36, %s39
      %p45 = scmp.eq.s32.totalorder %s26, 0
      %p46 = por %p44, %p45
      %p47 = scmp.ne.s32.totalorder %s36, %s39
      %p48 = scmp.eq.s32.totalorder %s31, 1
      %p49 = por %p47, %p48
      %p50 = scmp.ne.s32.totalorder %s39, %s40
      %p51 = scmp.eq.s32.totalorder %s31, 0
      %p52 = por %p50, %p51
      %p53 = scmp.ne.s32.totalorder %s39, %s40
      %p54 = scmp.eq.s32.totalorder %s32, 1
      %p55 = por %p53, %p54
      %p57 = scmp.ne.s32.totalorder %s40, %s56
      %p58 = scmp.eq.s32.totalorder %s32, 0
      %p59 = por %p57, %p58
      %s60 = ssub.s32 %s26, %s33
      %p61 = scmp.eq.s32.totalorder %s60, 0
      %s63 = sadd.s32 %s62, 1
      %s64 = scalar_select %p61, %s62, %s63
      %p67 = pneg %p61
      %p68 = scmp.eq.s32.totalorder %s26, 1
      %p69 = por %p67, %p68
      %p70 = scmp.ne.s32.totalorder %s62, %s65
      %p71 = scmp.eq.s32.totalorder %s26, 0
      %p72 = por %p70, %p71
      %p73 = scmp.ne.s32.totalorder %s62, %s65
      %p74 = scmp.eq.s32.totalorder %s31, 1
      %p75 = por %p73, %p74
      %p76 = scmp.ne.s32.totalorder %s65, %s66
      %p77 = scmp.eq.s32.totalorder %s31, 0
      %p78 = por %p76, %p77
      %p79 = scmp.ne.s32.totalorder %s65, %s66
      %p80 = scmp.eq.s32.totalorder %s32, 1
      %p81 = por %p79, %p80
      %p83 = scmp.ne.s32.totalorder %s66, %s82
      %p84 = scmp.eq.s32.totalorder %s32, 0
      %p85 = por %p83, %p84
      %s86 = ssub.s32 %s26, %s33
      %p87 = scmp.eq.s32.totalorder %s86, 0
      %s89 = sadd.s32 %s88, 1
      %s90 = scalar_select %p87, %s88, %s89
      %p93 = pneg %p87
      %p94 = scmp.eq.s32.totalorder %s26, 1
      %p95 = por %p93, %p94
      %p96 = scmp.ne.s32.totalorder %s88, %s91
      %p97 = scmp.eq.s32.totalorder %s26, 0
      %p98 = por %p96, %p97
      %p99 = scmp.ne.s32.totalorder %s88, %s91
      %p100 = scmp.eq.s32.totalorder %s31, 1
      %p101 = por %p99, %p100
      %p102 = scmp.ne.s32.totalorder %s91, %s92
      %p103 = scmp.eq.s32.totalorder %s31, 0
      %p104 = por %p102, %p103
      %p105 = scmp.ne.s32.totalorder %s91, %s92
      %p106 = scmp.eq.s32.totalorder %s32, 1
      %p107 = por %p105, %p106
      %p109 = scmp.ne.s32.totalorder %s92, %s108
      %p110 = scmp.eq.s32.totalorder %s32, 0
      %p111 = por %p109, %p110
      %s113 = sadd.s32 %s112, 1
      %p116 = scmp.eq.s32.totalorder %s26, 1
      %p117 = scmp.ne.s32.totalorder %s112, %s114
      %p118 = scmp.eq.s32.totalorder %s26, 0
      %p119 = por %p117, %p118
      %p120 = scmp.ne.s32.totalorder %s112, %s114
      %p121 = scmp.eq.s32.totalorder %s31, 1
      %p122 = por %p120, %p121
      %p123 = scmp.ne.s32.totalorder %s114, %s115
      %p124 = scmp.eq.s32.totalorder %s31, 0
      %p125 = por %p123, %p124
      %p126 = scmp.ne.s32.totalorder %s114, %s115
      %p127 = scmp.eq.s32.totalorder %s32, 1
      %p128 = por %p126, %p127
      %p130 = scmp.ne.s32.totalorder %s115, %s129
      %p131 = scmp.eq.s32.totalorder %s32, 0
      %p132 = por %p130, %p131
      %s134 = sadd.s32 %s133, 1
      %p137 = scmp.eq.s32.totalorder %s26, 1
      %p138 = scmp.ne.s32.totalorder %s133, %s135
      %p139 = scmp.eq.s32.totalorder %s26, 0
      %p140 = por %p138, %p139
      %p141 = scmp.ne.s32.totalorder %s133, %s135
      %p142 = scmp.eq.s32.totalorder %s31, 1
      %p143 = por %p141, %p142
      %p144 = scmp.ne.s32.totalorder %s135, %s136
      %p145 = scmp.eq.s32.totalorder %s31, 0
      %p146 = por %p144, %p145
      %p147 = scmp.ne.s32.totalorder %s135, %s136
      %p148 = scmp.eq.s32.totalorder %s32, 1
      %p149 = por %p147, %p148
      %p151 = scmp.ne.s32.totalorder %s136, %s150
      %p152 = scmp.eq.s32.totalorder %s32, 0
      %p153 = por %p151, %p152
      %s154 = ssub.s32 %s26, %s33
      %p155 = scmp.eq.s32.totalorder %s154, 0
      %s157 = sadd.s32 %s156, 1
      %s158 = scalar_select %p155, %s156, %s157
      %p161 = pneg %p155
      %p162 = scmp.eq.s32.totalorder %s26, 1
      %p163 = por %p161, %p162
      %p164 = scmp.ne.s32.totalorder %s156, %s159
      %p165 = scmp.eq.s32.totalorder %s26, 0
      %p166 = por %p164, %p165
      %p167 = scmp.ne.s32.totalorder %s156, %s159
      %p168 = scmp.eq.s32.totalorder %s31, 1
      %p169 = por %p167, %p168
      %p170 = scmp.ne.s32.totalorder %s159, %s160
      %p171 = scmp.eq.s32.totalorder %s31, 0
      %p172 = por %p170, %p171
      %p173 = scmp.ne.s32.totalorder %s159, %s160
      %p174 = scmp.eq.s32.totalorder %s32, 1
      %p175 = por %p173, %p174
      %p177 = scmp.ne.s32.totalorder %s160, %s176
      %p178 = scmp.eq.s32.totalorder %s32, 0
      %p179 = por %p177, %p178
      %p180 = scmp.le.s32.totalorder 1, %s26
      %p181 = scmp.lt.s32.totalorder %s26, 3
      %p182 = pnand %p180, %p181
      %p183 = pneg %p182
      // Predicated region
      $region9: #{nav_gcm_forward.1} parent=5 // pred_check
        _
      $region10: #{nav_gcm_forward.1} parent=5 // pred_check_branch
        %185 = sbr.rel (%p182) target = $region12
      $region11: #{nav_gcm_forward.1} parent=5 // pred_region
        %s186 = ssub.s32 %s26, 1
        // Predicated region
        $region13: #{nav_gcm_forward.1} parent=11 // pred_check
          %p187 = pneg %p125
        $region14: #{nav_gcm_forward.1} parent=11 // pred_check_branch
          %189 = sbr.rel (%p187) target = $region16
        $region15: #{nav_gcm_forward.1} parent=11 // pred_region
          _
        $region16: #{nav_gcm_forward.1} parent=11 // pred_fallthru
          _
        // Predicated region
        $region17: #{nav_gcm_forward.1} parent=11 // pred_check
          %p190 = pneg %p146
        $region18: #{nav_gcm_forward.1} parent=11 // pred_check_branch
          %192 = sbr.rel (%p190) target = $region20
        $region19: #{nav_gcm_forward.1} parent=11 // pred_region
          _
        $region20: #{nav_gcm_forward.1} parent=11 // pred_fallthru
          _
      $region12: #{nav_gcm_forward.1} parent=5 // pred_fallthru
        _
      %p193 = scmp.lt.s32.totalorder %s26, 2
      // Predicated region
      $region21: #{nav_gcm_forward.1} parent=5 // pred_check
        %p194 = pneg %p193
      $region22: #{nav_gcm_forward.1} parent=5 // pred_check_branch
        %196 = sbr.rel (%p194) target = $region24
      $region23: #{nav_gcm_forward.1} parent=5 // pred_region
        // Predicated region
        $region25: #{nav_gcm_forward.1} parent=23 // pred_check
          %p197 = pneg %p46
        $region26: #{nav_gcm_forward.1} parent=23 // pred_check_branch
          %199 = sbr.rel (%p197) target = $region28
        $region27: #{nav_gcm_forward.1} parent=23 // pred_region
          %s200 = smul.u32 16, %s26
          %p201 = scmp.lt.s32.totalorder %s200, 31
          %s202 = scalar_select %p201, %s200, 31
          %s203 = smul.addr %s202, 8
          %s204 = scalar_lea.vmem %s2, %s203
          %s205 = smul.u32 16, %s26
        $region28: #{nav_gcm_forward.1} parent=23 // pred_fallthru
          _
        // Predicated region
        $region29: #{nav_gcm_forward.1} parent=23 // pred_check
          %p206 = pneg %p72
        $region30: #{nav_gcm_forward.1} parent=23 // pred_check_branch
          %208 = sbr.rel (%p206) target = $region32
        $region31: #{nav_gcm_forward.1} parent=23 // pred_region
          %s209 = smul.u32 16, %s26
          %p210 = scmp.lt.s32.totalorder %s209, 31
          %s211 = scalar_select %p210, %s209, 31
          %s212 = smul.addr %s211, 8
          %s213 = scalar_lea.vmem %s3, %s212
          %s214 = smul.u32 16, %s26
        $region32: #{nav_gcm_forward.1} parent=23 // pred_fallthru
          _
        // Predicated region
        $region33: #{nav_gcm_forward.1} parent=23 // pred_check
          %p215 = pneg %p98
        $region34: #{nav_gcm_forward.1} parent=23 // pred_check_branch
          %217 = sbr.rel (%p215) target = $region36
        $region35: #{nav_gcm_forward.1} parent=23 // pred_region
          %p218 = scmp.lt.s32.totalorder %s26, 1
          %s219 = scalar_select %p218, %s26, 1
          %s220 = smul.addr %s219, 4
          %s221 = scalar_lea.vmem %s4, %s220
        $region36: #{nav_gcm_forward.1} parent=23 // pred_fallthru
          _
      $region24: #{nav_gcm_forward.1} parent=5 // pred_fallthru
        _
      %p222 = scmp.le.s32.totalorder 1, %s26
      %p223 = scmp.lt.s32.totalorder %s26, 3
      %p224 = pnand %p222, %p223
      %p225 = pneg %p224
      // Predicated region
      $region37: #{nav_gcm_forward.1} parent=5 // pred_check
        _
      $region38: #{nav_gcm_forward.1} parent=5 // pred_check_branch
        %227 = sbr.rel (%p224) target = $region40
      $region39: #{nav_gcm_forward.1} parent=5 // pred_region
        %s228 = ssub.s32 %s26, 1
        %s229 = smul.u32 16, %s31
        %p230 = scmp.lt.s32.totalorder %s229, 31
        %s231 = scalar_select %p230, %s229, 31
        %s232 = smul.addr %s231, 8
        %s233 = scalar_lea.vmem %s2, %s232
        %p234 = pneg %p52
        %p235 = pneg %p49
        %s236 = smul.u32 16, %s31
        %p237 = scmp.lt.s32.totalorder %s236, 31
        %s238 = scalar_select %p237, %s236, 31
        %s239 = smul.addr %s238, 8
        %s240 = scalar_lea.vmem %s3, %s239
        %p241 = pneg %p78
        %p242 = pneg %p75
        %p243 = scmp.lt.s32.totalorder %s31, 1
        %s244 = scalar_select %p243, %s31, 1
        %s245 = smul.addr %s244, 4
        %s246 = scalar_lea.vmem %s4, %s245
        %p247 = pneg %p104
        %p248 = pneg %p101
        %p249 = pneg %p125
        %p250 = pneg %p122
        %p251 = pneg %p146
        %p252 = pneg %p143
        %p253 = pneg %p172
        %p254 = pneg %p169
        %s255 = sand.u32 %s159, 1
        %s256 = scalar_lea.sflag [#allocation6], %s255
        %s257 = sand.u32 %s159, 1
        %s258 = smul.addr %s257, 32
        %s259 = scalar_lea.vmem [#allocation5], %s258
        %s260 = smul.u32 16, %s31
        %p261 = scmp.lt.s32.totalorder %s260, 31
        %s262 = scalar_select %p261, %s260, 31
        %s263 = smul.addr %s262, 8
        %s264 = scalar_lea.vmem %s2, %s263
        %s265 = smul.u32 16, %s31
        %s266 = smul.u32 16, %s31
        %p267 = scmp.lt.s32.totalorder %s266, 31
        %s268 = scalar_select %p267, %s266, 31
        %s269 = smul.addr %s268, 8
        %s270 = scalar_lea.vmem %s3, %s269
        %s271 = smul.u32 16, %s31
        %p272 = scmp.lt.s32.totalorder %s31, 1
        %s273 = scalar_select %p272, %s31, 1
        %s274 = smul.addr %s273, 4
        %s275 = scalar_lea.vmem %s4, %s274
        %s276 = smul.u32 4, %s31
        %v277 = vld [vmem:[%s264] sm:$0xff]
        %v278 = vld [vmem:[%s264 + $0x8] sm:$0xff]
        %v279 = vld [vmem:[%s264 + $0x10] sm:$0xff]
        %v280 = vld [vmem:[%s264 + $0x18] sm:$0xff]
        %v281 = vld [vmem:[%s264 + $0x20] sm:$0xff]
        %v282 = vld [vmem:[%s264 + $0x28] sm:$0xff]
        %v283 = vld [vmem:[%s264 + $0x30] sm:$0xff]
        %v284 = vld [vmem:[%s264 + $0x38] sm:$0xff]
        %v285 = vld [vmem:[%s264 + $0x40] sm:$0xff]
        %v286 = vld [vmem:[%s264 + $0x48] sm:$0xff]
        %v287 = vld [vmem:[%s264 + $0x50] sm:$0xff]
        %v288 = vld [vmem:[%s264 + $0x58] sm:$0xff]
        %v289 = vld [vmem:[%s264 + $0x60] sm:$0xff]
        %v290 = vld [vmem:[%s264 + $0x68] sm:$0xff]
        %v291 = vld [vmem:[%s264 + $0x70] sm:$0xff]
        %v292 = vld [vmem:[%s264 + $0x78] sm:$0xff]
        %v293 = vld [vmem:[%s270] sm:$0xff]
        %v294 = vld [vmem:[%s270 + $0x8] sm:$0xff]
        %v295 = vld [vmem:[%s270 + $0x10] sm:$0xff]
        %v296 = vld [vmem:[%s270 + $0x18] sm:$0xff]
        %v297 = vld [vmem:[%s270 + $0x20] sm:$0xff]
        %v298 = vld [vmem:[%s270 + $0x28] sm:$0xff]
        %v299 = vld [vmem:[%s270 + $0x30] sm:$0xff]
        %v300 = vld [vmem:[%s270 + $0x38] sm:$0xff]
        %v301 = vld [vmem:[%s270 + $0x40] sm:$0xff]
        %v302 = vld [vmem:[%s270 + $0x48] sm:$0xff]
        %v303 = vld [vmem:[%s270 + $0x50] sm:$0xff]
        %v304 = vld [vmem:[%s270 + $0x58] sm:$0xff]
        %v305 = vld [vmem:[%s270 + $0x60] sm:$0xff]
        %v306 = vld [vmem:[%s270 + $0x68] sm:$0xff]
        %v307 = vld [vmem:[%s270 + $0x70] sm:$0xff]
        %v308 = vld [vmem:[%s270 + $0x78] sm:$0xff]
        %v309 = vld [vmem:[%s275] sm:$0x7]
        %311 = vset.pattern.permute.xlu0 0
        %312 = vperm.xlu0 %311, %v293
        %v313 = vpop.permute.xlu0 %312
        %316 = vset.pattern.permute.xlu0 0
        %317 = vperm.xlu0 %316, %v294
        %v318 = vpop.permute.xlu0 %317
        %321 = vset.pattern.permute.xlu0 0
        %322 = vperm.xlu0 %321, %v295
        %v323 = vpop.permute.xlu0 %322
        %326 = vset.pattern.permute.xlu0 0
        %327 = vperm.xlu0 %326, %v296
        %v328 = vpop.permute.xlu0 %327
        %331 = vset.pattern.permute.xlu0 0
        %332 = vperm.xlu0 %331, %v297
        %v333 = vpop.permute.xlu0 %332
        %336 = vset.pattern.permute.xlu0 0
        %337 = vperm.xlu0 %336, %v298
        %v338 = vpop.permute.xlu0 %337
        %341 = vset.pattern.permute.xlu0 0
        %342 = vperm.xlu0 %341, %v299
        %v343 = vpop.permute.xlu0 %342
        %346 = vset.pattern.permute.xlu0 0
        %347 = vperm.xlu0 %346, %v300
        %v348 = vpop.permute.xlu0 %347
        %351 = vset.pattern.permute.xlu0 0
        %352 = vperm.xlu0 %351, %v301
        %v353 = vpop.permute.xlu0 %352
        %356 = vset.pattern.permute.xlu0 0
        %357 = vperm.xlu0 %356, %v302
        %v358 = vpop.permute.xlu0 %357
        %361 = vset.pattern.permute.xlu0 0
        %362 = vperm.xlu0 %361, %v303
        %v363 = vpop.permute.xlu0 %362
        %366 = vset.pattern.permute.xlu0 0
        %367 = vperm.xlu0 %366, %v304
        %v368 = vpop.permute.xlu0 %367
        %371 = vset.pattern.permute.xlu0 0
        %372 = vperm.xlu0 %371, %v305
        %v373 = vpop.permute.xlu0 %372
        %376 = vset.pattern.permute.xlu0 0
        %377 = vperm.xlu0 %376, %v306
        %v378 = vpop.permute.xlu0 %377
        %381 = vset.pattern.permute.xlu0 0
        %382 = vperm.xlu0 %381, %v307
        %v383 = vpop.permute.xlu0 %382
        %386 = vset.pattern.permute.xlu0 0
        %387 = vperm.xlu0 %386, %v308
        %v388 = vpop.permute.xlu0 %387
        %v390 = vlaneseq
        %v391 = vshrl.u32 %v390, 7
        %v392 = vsub.s32 0, %v391
        %v393 = vrot.slane %v309, %v392
        %v394 = vsub.f32 %v313, %v393
        %v395 = vsub.f32 %v318, %v393
        %v396 = vsub.f32 %v323, %v393
        %v397 = vsub.f32 %v328, %v393
        %v398 = vsub.f32 %v333, %v393
        %v399 = vsub.f32 %v338, %v393
        %v400 = vsub.f32 %v343, %v393
        %v401 = vsub.f32 %v348, %v393
        %v402 = vsub.f32 %v353, %v393
        %v403 = vsub.f32 %v358, %v393
        %v404 = vsub.f32 %v363, %v393
        %v405 = vsub.f32 %v368, %v393
        %v406 = vsub.f32 %v373, %v393
        %v407 = vsub.f32 %v378, %v393
        %v408 = vsub.f32 %v383, %v393
        %v409 = vsub.f32 %v388, %v393
        %v410 = vmul.f32 %v394, %v394
        %v411 = vmul.f32 %v395, %v395
        %v412 = vmul.f32 %v396, %v396
        %v413 = vmul.f32 %v397, %v397
        %v414 = vmul.f32 %v398, %v398
        %v415 = vmul.f32 %v399, %v399
        %v416 = vmul.f32 %v400, %v400
        %v417 = vmul.f32 %v401, %v401
        %v418 = vmul.f32 %v402, %v402
        %v419 = vmul.f32 %v403, %v403
        %v420 = vmul.f32 %v404, %v404
        %v421 = vmul.f32 %v405, %v405
        %v422 = vmul.f32 %v406, %v406
        %v423 = vmul.f32 %v407, %v407
        %v424 = vmul.f32 %v408, %v408
        %v425 = vmul.f32 %v409, %v409
        %426 = vset.pattern.permute.xlu0 1
        %427 = vperm.xlu0 %426, %v293
        %v428 = vpop.permute.xlu0 %427
        %430 = vset.pattern.permute.xlu0 1
        %431 = vperm.xlu0 %430, %v294
        %v432 = vpop.permute.xlu0 %431
        %434 = vset.pattern.permute.xlu0 1
        %435 = vperm.xlu0 %434, %v295
        %v436 = vpop.permute.xlu0 %435
        %438 = vset.pattern.permute.xlu0 1
        %439 = vperm.xlu0 %438, %v296
        %v440 = vpop.permute.xlu0 %439
        %442 = vset.pattern.permute.xlu0 1
        %443 = vperm.xlu0 %442, %v297
        %v444 = vpop.permute.xlu0 %443
        %446 = vset.pattern.permute.xlu0 1
        %447 = vperm.xlu0 %446, %v298
        %v448 = vpop.permute.xlu0 %447
        %450 = vset.pattern.permute.xlu0 1
        %451 = vperm.xlu0 %450, %v299
        %v452 = vpop.permute.xlu0 %451
        %454 = vset.pattern.permute.xlu0 1
        %455 = vperm.xlu0 %454, %v300
        %v456 = vpop.permute.xlu0 %455
        %458 = vset.pattern.permute.xlu0 1
        %459 = vperm.xlu0 %458, %v301
        %v460 = vpop.permute.xlu0 %459
        %462 = vset.pattern.permute.xlu0 1
        %463 = vperm.xlu0 %462, %v302
        %v464 = vpop.permute.xlu0 %463
        %466 = vset.pattern.permute.xlu0 1
        %467 = vperm.xlu0 %466, %v303
        %v468 = vpop.permute.xlu0 %467
        %470 = vset.pattern.permute.xlu0 1
        %471 = vperm.xlu0 %470, %v304
        %v472 = vpop.permute.xlu0 %471
        %474 = vset.pattern.permute.xlu0 1
        %475 = vperm.xlu0 %474, %v305
        %v476 = vpop.permute.xlu0 %475
        %478 = vset.pattern.permute.xlu0 1
        %479 = vperm.xlu0 %478, %v306
        %v480 = vpop.permute.xlu0 %479
        %482 = vset.pattern.permute.xlu0 1
        %483 = vperm.xlu0 %482, %v307
        %v484 = vpop.permute.xlu0 %483
        %486 = vset.pattern.permute.xlu0 1
        %487 = vperm.xlu0 %486, %v308
        %v488 = vpop.permute.xlu0 %487
        %v490 = vlaneseq
        %v491 = vshrl.u32 %v490, 7
        %v492 = vsub.s32 1, %v491
        %v493 = vrot.slane %v309, %v492
        %v494 = vsub.f32 %v428, %v493
        %v495 = vsub.f32 %v432, %v493
        %v496 = vsub.f32 %v436, %v493
        %v497 = vsub.f32 %v440, %v493
        %v498 = vsub.f32 %v444, %v493
        %v499 = vsub.f32 %v448, %v493
        %v500 = vsub.f32 %v452, %v493
        %v501 = vsub.f32 %v456, %v493
        %v502 = vsub.f32 %v460, %v493
        %v503 = vsub.f32 %v464, %v493
        %v504 = vsub.f32 %v468, %v493
        %v505 = vsub.f32 %v472, %v493
        %v506 = vsub.f32 %v476, %v493
        %v507 = vsub.f32 %v480, %v493
        %v508 = vsub.f32 %v484, %v493
        %v509 = vsub.f32 %v488, %v493
        %v510 = vmul.f32 %v494, %v494
        %v511 = vmul.f32 %v495, %v495
        %v512 = vmul.f32 %v496, %v496
        %v513 = vmul.f32 %v497, %v497
        %v514 = vmul.f32 %v498, %v498
        %v515 = vmul.f32 %v499, %v499
        %v516 = vmul.f32 %v500, %v500
        %v517 = vmul.f32 %v501, %v501
        %v518 = vmul.f32 %v502, %v502
        %v519 = vmul.f32 %v503, %v503
        %v520 = vmul.f32 %v504, %v504
        %v521 = vmul.f32 %v505, %v505
        %v522 = vmul.f32 %v506, %v506
        %v523 = vmul.f32 %v507, %v507
        %v524 = vmul.f32 %v508, %v508
        %v525 = vmul.f32 %v509, %v509
        %v526 = vadd.f32 %v410, %v510
        %v527 = vadd.f32 %v411, %v511
        %v528 = vadd.f32 %v412, %v512
        %v529 = vadd.f32 %v413, %v513
        %v530 = vadd.f32 %v414, %v514
        %v531 = vadd.f32 %v415, %v515
        %v532 = vadd.f32 %v416, %v516
        %v533 = vadd.f32 %v417, %v517
        %v534 = vadd.f32 %v418, %v518
        %v535 = vadd.f32 %v419, %v519
        %v536 = vadd.f32 %v420, %v520
        %v537 = vadd.f32 %v421, %v521
        %v538 = vadd.f32 %v422, %v522
        %v539 = vadd.f32 %v423, %v523
        %v540 = vadd.f32 %v424, %v524
        %v541 = vadd.f32 %v425, %v525
        %542 = vset.pattern.permute.xlu0 2
        %543 = vperm.xlu0 %542, %v293
        %v544 = vpop.permute.xlu0 %543
        %546 = vset.pattern.permute.xlu0 2
        %547 = vperm.xlu0 %546, %v294
        %v548 = vpop.permute.xlu0 %547
        %550 = vset.pattern.permute.xlu0 2
        %551 = vperm.xlu0 %550, %v295
        %v552 = vpop.permute.xlu0 %551
        %554 = vset.pattern.permute.xlu0 2
        %555 = vperm.xlu0 %554, %v296
        %v556 = vpop.permute.xlu0 %555
        %558 = vset.pattern.permute.xlu0 2
        %559 = vperm.xlu0 %558, %v297
        %v560 = vpop.permute.xlu0 %559
        %562 = vset.pattern.permute.xlu0 2
        %563 = vperm.xlu0 %562, %v298
        %v564 = vpop.permute.xlu0 %563
        %566 = vset.pattern.permute.xlu0 2
        %567 = vperm.xlu0 %566, %v299
        %v568 = vpop.permute.xlu0 %567
        %570 = vset.pattern.permute.xlu0 2
        %571 = vperm.xlu0 %570, %v300
        %v572 = vpop.permute.xlu0 %571
        %574 = vset.pattern.permute.xlu0 2
        %575 = vperm.xlu0 %574, %v301
        %v576 = vpop.permute.xlu0 %575
        %578 = vset.pattern.permute.xlu0 2
        %579 = vperm.xlu0 %578, %v302
        %v580 = vpop.permute.xlu0 %579
        %582 = vset.pattern.permute.xlu0 2
        %583 = vperm.xlu0 %582, %v303
        %v584 = vpop.permute.xlu0 %583
        %586 = vset.pattern.permute.xlu0 2
        %587 = vperm.xlu0 %586, %v304
        %v588 = vpop.permute.xlu0 %587
        %590 = vset.pattern.permute.xlu0 2
        %591 = vperm.xlu0 %590, %v305
        %v592 = vpop.permute.xlu0 %591
        %594 = vset.pattern.permute.xlu0 2
        %595 = vperm.xlu0 %594, %v306
        %v596 = vpop.permute.xlu0 %595
        %598 = vset.pattern.permute.xlu0 2
        %599 = vperm.xlu0 %598, %v307
        %v600 = vpop.permute.xlu0 %599
        %602 = vset.pattern.permute.xlu0 2
        %603 = vperm.xlu0 %602, %v308
        %v604 = vpop.permute.xlu0 %603
        %v606 = vlaneseq
        %v607 = vshrl.u32 %v606, 7
        %v608 = vsub.s32 2, %v607
        %v609 = vrot.slane %v309, %v608
        %v610 = vsub.f32 %v544, %v609
        %v611 = vsub.f32 %v548, %v609
        %v612 = vsub.f32 %v552, %v609
        %v613 = vsub.f32 %v556, %v609
        %v614 = vsub.f32 %v560, %v609
        %v615 = vsub.f32 %v564, %v609
        %v616 = vsub.f32 %v568, %v609
        %v617 = vsub.f32 %v572, %v609
        %v618 = vsub.f32 %v576, %v609
        %v619 = vsub.f32 %v580, %v609
        %v620 = vsub.f32 %v584, %v609
        %v621 = vsub.f32 %v588, %v609
        %v622 = vsub.f32 %v592, %v609
        %v623 = vsub.f32 %v596, %v609
        %v624 = vsub.f32 %v600, %v609
        %v625 = vsub.f32 %v604, %v609
        %v626 = vmul.f32 %v610, %v610
        %v627 = vmul.f32 %v611, %v611
        %v628 = vmul.f32 %v612, %v612
        %v629 = vmul.f32 %v613, %v613
        %v630 = vmul.f32 %v614, %v614
        %v631 = vmul.f32 %v615, %v615
        %v632 = vmul.f32 %v616, %v616
        %v633 = vmul.f32 %v617, %v617
        %v634 = vmul.f32 %v618, %v618
        %v635 = vmul.f32 %v619, %v619
        %v636 = vmul.f32 %v620, %v620
        %v637 = vmul.f32 %v621, %v621
        %v638 = vmul.f32 %v622, %v622
        %v639 = vmul.f32 %v623, %v623
        %v640 = vmul.f32 %v624, %v624
        %v641 = vmul.f32 %v625, %v625
        %v642 = vadd.f32 %v526, %v626
        %v643 = vadd.f32 %v527, %v627
        %v644 = vadd.f32 %v528, %v628
        %v645 = vadd.f32 %v529, %v629
        %v646 = vadd.f32 %v530, %v630
        %v647 = vadd.f32 %v531, %v631
        %v648 = vadd.f32 %v532, %v632
        %v649 = vadd.f32 %v533, %v633
        %v650 = vadd.f32 %v534, %v634
        %v651 = vadd.f32 %v535, %v635
        %v652 = vadd.f32 %v536, %v636
        %v653 = vadd.f32 %v537, %v637
        %v654 = vadd.f32 %v538, %v638
        %v655 = vadd.f32 %v539, %v639
        %v656 = vadd.f32 %v540, %v640
        %v657 = vadd.f32 %v541, %v641
        %v658 = vlaneseq
        %v659 = vshrl.u32 %v658, 7
        %v660 = vadd.s32 %v659, 8
        %v661 = vadd.s32 %v659, 16
        %v662 = vadd.s32 %v659, 24
        %v663 = vadd.s32 %v659, 32
        %v664 = vadd.s32 %v659, 40
        %v665 = vadd.s32 %v659, 48
        %v666 = vadd.s32 %v659, 56
        %v667 = vadd.s32 %v659, 64
        %v668 = vadd.s32 %v659, 72
        %v669 = vadd.s32 %v659, 80
        %v670 = vadd.s32 %v659, 88
        %v671 = vadd.s32 %v659, 96
        %v672 = vadd.s32 %v659, 104
        %v673 = vadd.s32 %v659, 112
        %v674 = vadd.s32 %v659, 120
        %v675 = vlaneseq
        %v676 = vand.u32 %v675, 127
        %v677 = vand.u32 %v659, 4294967264
        %v678 = vand.u32 %v660, 4294967264
        %v679 = vand.u32 %v661, 4294967264
        %v680 = vand.u32 %v662, 4294967264
        %v681 = vand.u32 %v663, 4294967264
        %v682 = vand.u32 %v664, 4294967264
        %v683 = vand.u32 %v665, 4294967264
        %v684 = vand.u32 %v666, 4294967264
        %v685 = vand.u32 %v667, 4294967264
        %v686 = vand.u32 %v668, 4294967264
        %v687 = vand.u32 %v669, 4294967264
        %v688 = vand.u32 %v670, 4294967264
        %v689 = vand.u32 %v671, 4294967264
        %v690 = vand.u32 %v672, 4294967264
        %v691 = vand.u32 %v673, 4294967264
        %v692 = vand.u32 %v674, 4294967264
        %vm693 = vcmp.le.f32.partialorder %v642, 1.0
        %vm694 = vcmp.le.f32.partialorder %v643, 1.0
        %vm695 = vcmp.le.f32.partialorder %v644, 1.0
        %vm696 = vcmp.le.f32.partialorder %v645, 1.0
        %vm697 = vcmp.le.f32.partialorder %v646, 1.0
        %vm698 = vcmp.le.f32.partialorder %v647, 1.0
        %vm699 = vcmp.le.f32.partialorder %v648, 1.0
        %vm700 = vcmp.le.f32.partialorder %v649, 1.0
        %vm701 = vcmp.le.f32.partialorder %v650, 1.0
        %vm702 = vcmp.le.f32.partialorder %v651, 1.0
        %vm703 = vcmp.le.f32.partialorder %v652, 1.0
        %vm704 = vcmp.le.f32.partialorder %v653, 1.0
        %vm705 = vcmp.le.f32.partialorder %v654, 1.0
        %vm706 = vcmp.le.f32.partialorder %v655, 1.0
        %vm707 = vcmp.le.f32.partialorder %v656, 1.0
        %vm708 = vcmp.le.f32.partialorder %v657, 1.0
        %vm709 = vcmp.lt.s32.totalorder %v676, %v659
        %vm710 = vcmp.lt.s32.totalorder %v676, %v660
        %vm711 = vcmp.lt.s32.totalorder %v676, %v661
        %vm712 = vcmp.lt.s32.totalorder %v676, %v662
        %vm713 = vcmp.lt.s32.totalorder %v676, %v663
        %vm714 = vcmp.lt.s32.totalorder %v676, %v664
        %vm715 = vcmp.lt.s32.totalorder %v676, %v665
        %vm716 = vcmp.lt.s32.totalorder %v676, %v666
        %vm717 = vcmp.lt.s32.totalorder %v676, %v667
        %vm718 = vcmp.lt.s32.totalorder %v676, %v668
        %vm719 = vcmp.lt.s32.totalorder %v676, %v669
        %vm720 = vcmp.lt.s32.totalorder %v676, %v670
        %vm721 = vcmp.lt.s32.totalorder %v676, %v671
        %vm722 = vcmp.lt.s32.totalorder %v676, %v672
        %vm723 = vcmp.lt.s32.totalorder %v676, %v673
        %vm724 = vcmp.lt.s32.totalorder %v676, %v674
        %vm725 = vmand %vm693, %vm709
        %vm726 = vmand %vm694, %vm710
        %vm727 = vmand %vm695, %vm711
        %vm728 = vmand %vm696, %vm712
        %vm729 = vmand %vm697, %vm713
        %vm730 = vmand %vm698, %vm714
        %vm731 = vmand %vm699, %vm715
        %vm732 = vmand %vm700, %vm716
        %vm733 = vmand %vm701, %vm717
        %vm734 = vmand %vm702, %vm718
        %vm735 = vmand %vm703, %vm719
        %vm736 = vmand %vm704, %vm720
        %vm737 = vmand %vm705, %vm721
        %vm738 = vmand %vm706, %vm722
        %vm739 = vmand %vm707, %vm723
        %vm740 = vmand %vm708, %vm724
        %vm741 = vcmp.ge.s32.totalorder %v676, %v677
        %vm742 = vcmp.ge.s32.totalorder %v676, %v678
        %vm743 = vcmp.ge.s32.totalorder %v676, %v679
        %vm744 = vcmp.ge.s32.totalorder %v676, %v680
        %vm745 = vcmp.ge.s32.totalorder %v676, %v681
        %vm746 = vcmp.ge.s32.totalorder %v676, %v682
        %vm747 = vcmp.ge.s32.totalorder %v676, %v683
        %vm748 = vcmp.ge.s32.totalorder %v676, %v684
        %vm749 = vcmp.ge.s32.totalorder %v676, %v685
        %vm750 = vcmp.ge.s32.totalorder %v676, %v686
        %vm751 = vcmp.ge.s32.totalorder %v676, %v687
        %vm752 = vcmp.ge.s32.totalorder %v676, %v688
        %vm753 = vcmp.ge.s32.totalorder %v676, %v689
        %vm754 = vcmp.ge.s32.totalorder %v676, %v690
        %vm755 = vcmp.ge.s32.totalorder %v676, %v691
        %vm756 = vcmp.ge.s32.totalorder %v676, %v692
        %vm757 = vmand %vm725, %vm741
        %vm758 = vmand %vm726, %vm742
        %vm759 = vmand %vm727, %vm743
        %vm760 = vmand %vm728, %vm744
        %vm761 = vmand %vm729, %vm745
        %vm762 = vmand %vm730, %vm746
        %vm763 = vmand %vm731, %vm747
        %vm764 = vmand %vm732, %vm748
        %vm765 = vmand %vm733, %vm749
        %vm766 = vmand %vm734, %vm750
        %vm767 = vmand %vm735, %vm751
        %vm768 = vmand %vm736, %vm752
        %vm769 = vmand %vm737, %vm753
        %vm770 = vmand %vm738, %vm754
        %vm771 = vmand %vm739, %vm755
        %vm772 = vmand %vm740, %vm756
        %v773 = vsel %vm757, 1, 0
        %v774 = vsel %vm758, 1, 0
        %v775 = vsel %vm759, 1, 0
        %v776 = vsel %vm760, 1, 0
        %v777 = vsel %vm761, 1, 0
        %v778 = vsel %vm762, 1, 0
        %v779 = vsel %vm763, 1, 0
        %v780 = vsel %vm764, 1, 0
        %v781 = vsel %vm765, 1, 0
        %v782 = vsel %vm766, 1, 0
        %v783 = vsel %vm767, 1, 0
        %v784 = vsel %vm768, 1, 0
        %v785 = vsel %vm769, 1, 0
        %v786 = vsel %vm770, 1, 0
        %v787 = vsel %vm771, 1, 0
        %v788 = vsel %vm772, 1, 0
        %v789 = vcvt.s32.f32 %v773
        %v790 = vcvt.s32.f32 %v774
        %v791 = vcvt.s32.f32 %v775
        %v792 = vcvt.s32.f32 %v776
        %v793 = vcvt.s32.f32 %v777
        %v794 = vcvt.s32.f32 %v778
        %v795 = vcvt.s32.f32 %v779
        %v796 = vcvt.s32.f32 %v780
        %v797 = vcvt.s32.f32 %v781
        %v798 = vcvt.s32.f32 %v782
        %v799 = vcvt.s32.f32 %v783
        %v800 = vcvt.s32.f32 %v784
        %v801 = vcvt.s32.f32 %v785
        %v802 = vcvt.s32.f32 %v786
        %v803 = vcvt.s32.f32 %v787
        %v804 = vcvt.s32.f32 %v788
        %v805 = vld [vmem:[%s5] sm:$0xff]
        %v806 = vld [vmem:[%s5 + $0x8] sm:$0xff]
        %v807 = vld [vmem:[%s5 + $0x10] sm:$0xff]
        %v808 = vld [vmem:[%s5 + $0x18] sm:$0xff]
        %v809 = vld [vmem:[%s5 + $0x20] sm:$0xff]
        %v810 = vld [vmem:[%s5 + $0x28] sm:$0xff]
        %v811 = vld [vmem:[%s5 + $0x30] sm:$0xf]
        %v812 = vld [vmem:[%s5 + $0x38] sm:$0xf]
        %vm813 = vcmask 228352
        %v815 = vsel %vm813, %v277, 0
        %v818 = vsel %vm813, %v278, 0
        %v821 = vsel %vm813, %v279, 0
        %v824 = vsel %vm813, %v280, 0
        %v827 = vsel %vm813, %v281, 0
        %v830 = vsel %vm813, %v282, 0
        %v833 = vsel %vm813, %v283, 0
        %v836 = vsel %vm813, %v284, 0
        %v839 = vsel %vm813, %v285, 0
        %v842 = vsel %vm813, %v286, 0
        %v845 = vsel %vm813, %v287, 0
        %v848 = vsel %vm813, %v288, 0
        %v851 = vsel %vm813, %v289, 0
        %v854 = vsel %vm813, %v290, 0
        %v857 = vsel %vm813, %v291, 0
        %v860 = vsel %vm813, %v292, 0
        %vm862 = vcmask 1043456
        %v864 = vsel %vm862, %v811, 0
        %v867 = vsel %vm862, %v812, 0
        %869 = vmatprep.subr.mxu0 %v806
        %870 = vmatpush1.msra.mxu0 %v805
        %871 = vmatprep.subr.mxu0 %v808
        %872 = vmatpush1.msra.mxu0 %v807
        %873 = vmatprep.subr.mxu0 %v810
        %874 = vmatpush1.msra.mxu0 %v809
        %875 = vmatprep.subr.mxu0 %v867
        %876 = vmatpush1.msra.mxu0 %v864
        %877 = vmatprep.subr.mxu0 0.0
        %878 = vmatpush1.msra.mxu0 0.0
        %879 = vmatprep.subr.mxu0 0.0
        %880 = vmatpush1.msra.mxu0 0.0
        %881 = vmatprep.subr.mxu0 0.0
        %882 = vmatpush1.msra.mxu0 0.0
        %883 = vmatprep.subr.mxu0 0.0
        %884 = vmatpush1.msra.mxu0 0.0
        %885 = vmatprep.subr.mxu0 0.0
        %886 = vmatpush1.msra.mxu0 0.0
        %887 = vmatprep.subr.mxu0 0.0
        %888 = vmatpush1.msra.mxu0 0.0
        %889 = vmatprep.subr.mxu0 0.0
        %890 = vmatpush1.msra.mxu0 0.0
        %891 = vmatprep.subr.mxu0 0.0
        %892 = vmatpush1.msra.mxu0 0.0
        %893 = vmatprep.subr.mxu0 0.0
        %894 = vmatpush1.msra.mxu0 0.0
        %895 = vmatprep.subr.mxu0 0.0
        %896 = vmatpush1.msra.mxu0 0.0
        %897 = vmatprep.subr.mxu0 0.0
        %898 = vmatpush1.msra.mxu0 0.0
        %899 = vmatprep.subr.mxu0 0.0
        %900 = vmatpush1.msra.mxu0 0.0
        %901 = vmatprep.subr.mxu0 0.0
        %902 = vmatpush1.msra.mxu0 0.0
        %903 = vmatprep.subr.mxu0 0.0
        %904 = vmatpush1.msra.mxu0 0.0
        %905 = vmatprep.subr.mxu0 0.0
        %906 = vmatpush1.msra.mxu0 0.0
        %907 = vmatprep.subr.mxu0 0.0
        %908 = vmatpush1.msra.mxu0 0.0
        %909 = vmatprep.subr.mxu0 0.0
        %910 = vmatpush1.msra.mxu0 0.0
        %911 = vmatprep.subr.mxu0 0.0
        %912 = vmatpush1.msra.mxu0 0.0
        %913 = vmatprep.subr.mxu0 0.0
        %914 = vmatpush1.msra.mxu0 0.0
        %915 = vmatprep.subr.mxu0 0.0
        %916 = vmatpush1.msra.mxu0 0.0
        %917 = vmatprep.subr.mxu0 0.0
        %918 = vmatpush1.msra.mxu0 0.0
        %919 = vmatprep.subr.mxu0 0.0
        %920 = vmatpush1.msra.mxu0 0.0
        %921 = vmatprep.subr.mxu0 0.0
        %922 = vmatpush1.msra.mxu0 0.0
        %923 = vmatprep.subr.mxu0 0.0
        %924 = vmatpush1.msra.mxu0 0.0
        %925 = vmatprep.subr.mxu0 0.0
        %926 = vmatpush1.msra.mxu0 0.0
        %927 = vmatprep.subr.mxu0 0.0
        %928 = vmatpush1.msra.mxu0 0.0
        %929 = vmatprep.subr.mxu0 0.0
        %930 = vmatpush1.msra.mxu0 0.0
        %931 = vmatprep.subr.mxu0 0.0
        %932 = vmatpush1.msra.mxu0 0.0
        %933 = vmatprep.mubr.f32.mxu0 0.0
        %934 = vmatmul.mubr.f32.gmra.mrb[0].mxu0 %v815
        %v935 = vpop.f32.mrb[0].mxu0
        %v936 = vadd.f32 0.0, %v935
        %v937 = vpop.f32.mrb[0].mxu0
        %v938 = vadd.f32 0.0, %v937
        %939 = vmatprep.mubr.f32.mxu0 0.0
        %940 = vmatmul.mubr.f32.gmra.mrb[0].mxu0 %v818
        %v941 = vpop.f32.mrb[0].mxu0
        %v942 = vadd.f32 0.0, %v941
        %v943 = vpop.f32.mrb[0].mxu0
        %v944 = vadd.f32 0.0, %v943
        %945 = vmatprep.mubr.f32.mxu0 0.0
        %946 = vmatmul.mubr.f32.gmra.mrb[0].mxu0 %v821
        %v947 = vpop.f32.mrb[0].mxu0
        %v948 = vadd.f32 0.0, %v947
        %v949 = vpop.f32.mrb[0].mxu0
        %v950 = vadd.f32 0.0, %v949
        %951 = vmatprep.mubr.f32.mxu0 0.0
        %952 = vmatmul.mubr.f32.gmra.mrb[0].mxu0 %v824
        %v953 = vpop.f32.mrb[0].mxu0
        %v954 = vadd.f32 0.0, %v953
        %v955 = vpop.f32.mrb[0].mxu0
        %v956 = vadd.f32 0.0, %v955
        %957 = vmatprep.mubr.f32.mxu0 0.0
        %958 = vmatmul.mubr.f32.gmra.mrb[0].mxu0 %v827
        %v959 = vpop.f32.mrb[0].mxu0
        %v960 = vadd.f32 0.0, %v959
        %v961 = vpop.f32.mrb[0].mxu0
        %v962 = vadd.f32 0.0, %v961
        %963 = vmatprep.mubr.f32.mxu0 0.0
        %964 = vmatmul.mubr.f32.gmra.mrb[0].mxu0 %v830
        %v965 = vpop.f32.mrb[0].mxu0
        %v966 = vadd.f32 0.0, %v965
        %v967 = vpop.f32.mrb[0].mxu0
        %v968 = vadd.f32 0.0, %v967
        %969 = vmatprep.mubr.f32.mxu0 0.0
        %970 = vmatmul.mubr.f32.gmra.mrb[0].mxu0 %v833
        %v971 = vpop.f32.mrb[0].mxu0
        %v972 = vadd.f32 0.0, %v971
        %v973 = vpop.f32.mrb[0].mxu0
        %v974 = vadd.f32 0.0, %v973
        %975 = vmatprep.mubr.f32.mxu0 0.0
        %976 = vmatmul.mubr.f32.gmra.mrb[0].mxu0 %v836
        %v977 = vpop.f32.mrb[0].mxu0
        %v978 = vadd.f32 0.0, %v977
        %v979 = vpop.f32.mrb[0].mxu0
        %v980 = vadd.f32 0.0, %v979
        %981 = vmatprep.mubr.f32.mxu0 0.0
        %982 = vmatmul.mubr.f32.gmra.mrb[0].mxu0 %v839
        %v983 = vpop.f32.mrb[0].mxu0
        %v984 = vadd.f32 0.0, %v983
        %v985 = vpop.f32.mrb[0].mxu0
        %v986 = vadd.f32 0.0, %v985
        %987 = vmatprep.mubr.f32.mxu0 0.0
        %988 = vmatmul.mubr.f32.gmra.mrb[0].mxu0 %v842
        %v989 = vpop.f32.mrb[0].mxu0
        %v990 = vadd.f32 0.0, %v989
        %v991 = vpop.f32.mrb[0].mxu0
        %v992 = vadd.f32 0.0, %v991
        %993 = vmatprep.mubr.f32.mxu0 0.0
        %994 = vmatmul.mubr.f32.gmra.mrb[0].mxu0 %v845
        %v995 = vpop.f32.mrb[0].mxu0
        %v996 = vadd.f32 0.0, %v995
        %v997 = vpop.f32.mrb[0].mxu0
        %v998 = vadd.f32 0.0, %v997
        %999 = vmatprep.mubr.f32.mxu0 0.0
        %1000 = vmatmul.mubr.f32.gmra.mrb[0].mxu0 %v848
        %v1001 = vpop.f32.mrb[0].mxu0
        %v1002 = vadd.f32 0.0, %v1001
        %v1003 = vpop.f32.mrb[0].mxu0
        %v1004 = vadd.f32 0.0, %v1003
        %1005 = vmatprep.mubr.f32.mxu0 0.0
        %1006 = vmatmul.mubr.f32.gmra.mrb[0].mxu0 %v851
        %v1007 = vpop.f32.mrb[0].mxu0
        %v1008 = vadd.f32 0.0, %v1007
        %v1009 = vpop.f32.mrb[0].mxu0
        %v1010 = vadd.f32 0.0, %v1009
        %1011 = vmatprep.mubr.f32.mxu0 0.0
        %1012 = vmatmul.mubr.f32.gmra.mrb[0].mxu0 %v854
        %v1013 = vpop.f32.mrb[0].mxu0
        %v1014 = vadd.f32 0.0, %v1013
        %v1015 = vpop.f32.mrb[0].mxu0
        %v1016 = vadd.f32 0.0, %v1015
        %1017 = vmatprep.mubr.f32.mxu0 0.0
        %1018 = vmatmul.mubr.f32.gmra.mrb[0].mxu0 %v857
        %v1019 = vpop.f32.mrb[0].mxu0
        %v1020 = vadd.f32 0.0, %v1019
        %v1021 = vpop.f32.mrb[0].mxu0
        %v1022 = vadd.f32 0.0, %v1021
        %1023 = vmatprep.mubr.f32.mxu0 0.0
        %1024 = vmatmul.mubr.f32.gmra.mrb[0].mxu0 %v860
        %v1025 = vpop.f32.mrb[0].mxu0
        %v1026 = vadd.f32 0.0, %v1025
        %v1027 = vpop.f32.mrb[0].mxu0
        %v1028 = vadd.f32 0.0, %v1027
        %1029 = vdwg.mxu0
        %1030 = vmatprep.subr.mxu0 0.0
        %1031 = vmatpush1.msra.mxu0 %v938
        %1032 = vmatprep.subr.mxu0 0.0
        %1033 = vmatpush1.msra.mxu0 %v944
        %1034 = vmatprep.subr.mxu0 0.0
        %1035 = vmatpush1.msra.mxu0 %v950
        %1036 = vmatprep.subr.mxu0 0.0
        %1037 = vmatpush1.msra.mxu0 %v956
        %1038 = vmatprep.subr.mxu0 0.0
        %1039 = vmatpush1.msra.mxu0 %v962
        %1040 = vmatprep.subr.mxu0 0.0
        %1041 = vmatpush1.msra.mxu0 %v968
        %1042 = vmatprep.subr.mxu0 0.0
        %1043 = vmatpush1.msra.mxu0 %v974
        %1044 = vmatprep.subr.mxu0 0.0
        %1045 = vmatpush1.msra.mxu0 %v980
        %1046 = vmatprep.subr.mxu0 0.0
        %1047 = vmatpush1.msra.mxu0 %v986
        %1048 = vmatprep.subr.mxu0 0.0
        %1049 = vmatpush1.msra.mxu0 %v992
        %1050 = vmatprep.subr.mxu0 0.0
        %1051 = vmatpush1.msra.mxu0 %v998
        %1052 = vmatprep.subr.mxu0 0.0
        %1053 = vmatpush1.msra.mxu0 %v1004
        %1054 = vmatprep.subr.mxu0 0.0
        %1055 = vmatpush1.msra.mxu0 %v1010
        %1056 = vmatprep.subr.mxu0 0.0
        %1057 = vmatpush1.msra.mxu0 %v1016
        %1058 = vmatprep.subr.mxu0 0.0
        %1059 = vmatpush1.msra.mxu0 %v1022
        %1060 = vmatprep.subr.mxu0 0.0
        %1061 = vmatpush1.msra.mxu0 %v1028
        %1062 = vmatprep.subr.mxu0 0.0
        %1063 = vmatpush1.msra.mxu0 0.0
        %1064 = vmatprep.subr.mxu0 0.0
        %1065 = vmatpush1.msra.mxu0 0.0
        %1066 = vmatprep.subr.mxu0 0.0
        %1067 = vmatpush1.msra.mxu0 0.0
        %1068 = vmatprep.subr.mxu0 0.0
        %1069 = vmatpush1.msra.mxu0 0.0
        %1070 = vmatprep.subr.mxu0 0.0
        %1071 = vmatpush1.msra.mxu0 0.0
        %1072 = vmatprep.subr.mxu0 0.0
        %1073 = vmatpush1.msra.mxu0 0.0
        %1074 = vmatprep.subr.mxu0 0.0
        %1075 = vmatpush1.msra.mxu0 0.0
        %1076 = vmatprep.subr.mxu0 0.0
        %1077 = vmatpush1.msra.mxu0 0.0
        %1078 = vmatprep.subr.mxu0 0.0
        %1079 = vmatpush1.msra.mxu0 0.0
        %1080 = vmatprep.subr.mxu0 0.0
        %1081 = vmatpush1.msra.mxu0 0.0
        %1082 = vmatprep.subr.mxu0 0.0
        %1083 = vmatpush1.msra.mxu0 0.0
        %1084 = vmatprep.subr.mxu0 0.0
        %1085 = vmatpush1.msra.mxu0 0.0
        %1086 = vmatprep.subr.mxu0 0.0
        %1087 = vmatpush1.msra.mxu0 0.0
        %1088 = vmatprep.subr.mxu0 0.0
        %1089 = vmatpush1.msra.mxu0 0.0
        %1090 = vmatprep.subr.mxu0 0.0
        %1091 = vmatpush1.msra.mxu0 0.0
        %1092 = vmatprep.subr.mxu0 0.0
        %1093 = vmatpush1.msra.mxu0 0.0
        %1094 = vmatprep.mubr.f32.mxu0 0.0
        %1095 = vmatmul.mubr.f32.gmra.mrb[0].mxu0 %v789
        %v1096 = vpop.f32.mrb[0].mxu0
        %v1097 = vadd.f32 0.0, %v1096
        %v1098 = vpop.f32.mrb[0].mxu0
        %1099 = vmatprep.mubr.f32.mxu0 0.0
        %1100 = vmatmul.mubr.f32.gmra.mrb[0].mxu0 %v790
        %v1101 = vpop.f32.mrb[0].mxu0
        %v1102 = vadd.f32 0.0, %v1101
        %v1103 = vpop.f32.mrb[0].mxu0
        %1104 = vmatprep.mubr.f32.mxu0 0.0
        %1105 = vmatmul.mubr.f32.gmra.mrb[0].mxu0 %v791
        %v1106 = vpop.f32.mrb[0].mxu0
        %v1107 = vadd.f32 0.0, %v1106
        %v1108 = vpop.f32.mrb[0].mxu0
        %1109 = vmatprep.mubr.f32.mxu0 0.0
        %1110 = vmatmul.mubr.f32.gmra.mrb[0].mxu0 %v792
        %v1111 = vpop.f32.mrb[0].mxu0
        %v1112 = vadd.f32 0.0, %v1111
        %v1113 = vpop.f32.mrb[0].mxu0
        %1114 = vmatprep.mubr.f32.mxu0 0.0
        %1115 = vmatmul.mubr.f32.gmra.mrb[0].mxu0 %v793
        %v1116 = vpop.f32.mrb[0].mxu0
        %v1117 = vadd.f32 0.0, %v1116
        %v1118 = vpop.f32.mrb[0].mxu0
        %1119 = vmatprep.mubr.f32.mxu0 0.0
        %1120 = vmatmul.mubr.f32.gmra.mrb[0].mxu0 %v794
        %v1121 = vpop.f32.mrb[0].mxu0
        %v1122 = vadd.f32 0.0, %v1121
        %v1123 = vpop.f32.mrb[0].mxu0
        %1124 = vmatprep.mubr.f32.mxu0 0.0
        %1125 = vmatmul.mubr.f32.gmra.mrb[0].mxu0 %v795
        %v1126 = vpop.f32.mrb[0].mxu0
        %v1127 = vadd.f32 0.0, %v1126
        %v1128 = vpop.f32.mrb[0].mxu0
        %1129 = vmatprep.mubr.f32.mxu0 0.0
        %1130 = vmatmul.mubr.f32.gmra.mrb[0].mxu0 %v796
        %v1131 = vpop.f32.mrb[0].mxu0
        %v1132 = vadd.f32 0.0, %v1131
        %v1133 = vpop.f32.mrb[0].mxu0
        %1134 = vmatprep.mubr.f32.mxu0 0.0
        %1135 = vmatmul.mubr.f32.gmra.mrb[0].mxu0 %v797
        %v1136 = vpop.f32.mrb[0].mxu0
        %v1137 = vadd.f32 0.0, %v1136
        %v1138 = vpop.f32.mrb[0].mxu0
        %1139 = vmatprep.mubr.f32.mxu0 0.0
        %1140 = vmatmul.mubr.f32.gmra.mrb[0].mxu0 %v798
        %v1141 = vpop.f32.mrb[0].mxu0
        %v1142 = vadd.f32 0.0, %v1141
        %v1143 = vpop.f32.mrb[0].mxu0
        %1144 = vmatprep.mubr.f32.mxu0 0.0
        %1145 = vmatmul.mubr.f32.gmra.mrb[0].mxu0 %v799
        %v1146 = vpop.f32.mrb[0].mxu0
        %v1147 = vadd.f32 0.0, %v1146
        %v1148 = vpop.f32.mrb[0].mxu0
        %1149 = vmatprep.mubr.f32.mxu0 0.0
        %1150 = vmatmul.mubr.f32.gmra.mrb[0].mxu0 %v800
        %v1151 = vpop.f32.mrb[0].mxu0
        %v1152 = vadd.f32 0.0, %v1151
        %v1153 = vpop.f32.mrb[0].mxu0
        %1154 = vmatprep.mubr.f32.mxu0 0.0
        %1155 = vmatmul.mubr.f32.gmra.mrb[0].mxu0 %v801
        %v1156 = vpop.f32.mrb[0].mxu0
        %v1157 = vadd.f32 0.0, %v1156
        %v1158 = vpop.f32.mrb[0].mxu0
        %1159 = vmatprep.mubr.f32.mxu0 0.0
        %1160 = vmatmul.mubr.f32.gmra.mrb[0].mxu0 %v802
        %v1161 = vpop.f32.mrb[0].mxu0
        %v1162 = vadd.f32 0.0, %v1161
        %v1163 = vpop.f32.mrb[0].mxu0
        %1164 = vmatprep.mubr.f32.mxu0 0.0
        %1165 = vmatmul.mubr.f32.gmra.mrb[0].mxu0 %v803
        %v1166 = vpop.f32.mrb[0].mxu0
        %v1167 = vadd.f32 0.0, %v1166
        %v1168 = vpop.f32.mrb[0].mxu0
        %1169 = vmatprep.mubr.f32.mxu0 0.0
        %1170 = vmatmul.mubr.f32.gmra.mrb[0].mxu0 %v804
        %v1171 = vpop.f32.mrb[0].mxu0
        %v1172 = vadd.f32 0.0, %v1171
        %v1173 = vpop.f32.mrb[0].mxu0
        %1174 = vdwg.mxu0
        %v1175 = vadd.f32 %v936, %v1097
        %v1176 = vadd.f32 %v942, %v1102
        %v1177 = vadd.f32 %v948, %v1107
        %v1178 = vadd.f32 %v954, %v1112
        %v1179 = vadd.f32 %v960, %v1117
        %v1180 = vadd.f32 %v966, %v1122
        %v1181 = vadd.f32 %v972, %v1127
        %v1182 = vadd.f32 %v978, %v1132
        %v1183 = vadd.f32 %v984, %v1137
        %v1184 = vadd.f32 %v990, %v1142
        %v1185 = vadd.f32 %v996, %v1147
        %v1186 = vadd.f32 %v1002, %v1152
        %v1187 = vadd.f32 %v1008, %v1157
        %v1188 = vadd.f32 %v1014, %v1162
        %v1189 = vadd.f32 %v1020, %v1167
        %v1190 = vadd.f32 %v1026, %v1172
        %v1191 = vld [vmem:[%s6] sm:$0x1]
        %v1193 = vlaneseq
        %v1194 = vshrl.u32 %v1193, 7
        %v1195 = vsub.s32 0, %v1194
        %v1196 = vrot.slane %v1191, %v1195
        %v1198 = vadd.f32 %v1175, %v1196
        %v1199 = vadd.f32 %v1176, %v1196
        %v1200 = vadd.f32 %v1177, %v1196
        %v1201 = vadd.f32 %v1178, %v1196
        %v1202 = vadd.f32 %v1179, %v1196
        %v1203 = vadd.f32 %v1180, %v1196
        %v1204 = vadd.f32 %v1181, %v1196
        %v1205 = vadd.f32 %v1182, %v1196
        %v1206 = vadd.f32 %v1183, %v1196
        %v1207 = vadd.f32 %v1184, %v1196
        %v1208 = vadd.f32 %v1185, %v1196
        %v1209 = vadd.f32 %v1186, %v1196
        %v1210 = vadd.f32 %v1187, %v1196
        %v1211 = vadd.f32 %v1188, %v1196
        %v1212 = vadd.f32 %v1189, %v1196
        %v1213 = vadd.f32 %v1190, %v1196
        %v1214 = vmax.f32 %v1198, 0.0
        %v1215 = vmax.f32 %v1199, 0.0
        %v1216 = vmax.f32 %v1200, 0.0
        %v1217 = vmax.f32 %v1201, 0.0
        %v1218 = vmax.f32 %v1202, 0.0
        %v1219 = vmax.f32 %v1203, 0.0
        %v1220 = vmax.f32 %v1204, 0.0
        %v1221 = vmax.f32 %v1205, 0.0
        %v1222 = vmax.f32 %v1206, 0.0
        %v1223 = vmax.f32 %v1207, 0.0
        %v1224 = vmax.f32 %v1208, 0.0
        %v1225 = vmax.f32 %v1209, 0.0
        %v1226 = vmax.f32 %v1210, 0.0
        %v1227 = vmax.f32 %v1211, 0.0
        %v1228 = vmax.f32 %v1212, 0.0
        %v1229 = vmax.f32 %v1213, 0.0
        %s1230 = smul.u32 %s31, 4
        %vm1231 = vcmp.ge.s32.totalorder %v659, 0
        %vm1232 = vcmp.ge.s32.totalorder %v660, 0
        %vm1233 = vcmp.ge.s32.totalorder %v661, 0
        %vm1234 = vcmp.ge.s32.totalorder %v662, 0
        %vm1235 = vcmp.lt.s32.totalorder %v659, 8
        %vm1236 = vcmp.lt.s32.totalorder %v660, 8
        %vm1237 = vcmp.lt.s32.totalorder %v661, 8
        %vm1238 = vcmp.lt.s32.totalorder %v662, 8
        %vm1239 = vmand %vm1231, %vm1235
        %vm1240 = vmand %vm1232, %vm1236
        %vm1241 = vmand %vm1233, %vm1237
        %vm1242 = vmand %vm1234, %vm1238
        %s1243 = sld [smem:[#allocation3 + %s1230]]
        %v1244 = vstv %s1243
        %v1245 = vadd.s32 %v1244, %v659
        %v1246 = vadd.s32 %v1244, %v660
        %v1247 = vadd.s32 %v1244, %v661
        %v1248 = vadd.s32 %v1244, %v662
        %v1249 = vsel %vm1239, %v1245, 0
        %v1250 = vsel %vm1240, %v1246, 0
        %v1251 = vsel %vm1241, %v1247, 0
        %v1252 = vsel %vm1242, %v1248, 0
        %s1253 = sld [smem:[#allocation4 + %s1230]]
        %v1254 = vstv %s1253
        %vm1255 = vcmp.lt.s32.totalorder %v659, %v1254
        %vm1256 = vcmp.lt.s32.totalorder %v660, %v1254
        %vm1257 = vcmp.lt.s32.totalorder %v661, %v1254
        %vm1258 = vcmp.lt.s32.totalorder %v662, %v1254
        %vm1259 = vmand %vm1239, %vm1255
        %vm1260 = vmand %vm1240, %vm1256
        %vm1261 = vmand %vm1241, %vm1257
        %vm1262 = vmand %vm1242, %vm1258
        %s1263 = sadd.s32 %s1230, 1
        %v1264 = vsub.s32 %v659, 8
        %v1265 = vsub.s32 %v661, 8
        %v1266 = vsub.s32 %v662, 8
        %vm1267 = vcmp.ge.s32.totalorder %v1264, 0
        %vm1268 = vcmp.ge.s32.totalorder %v1265, 0
        %vm1269 = vcmp.ge.s32.totalorder %v1266, 0
        %vm1270 = vcmp.lt.s32.totalorder %v1264, 8
        %vm1271 = vcmp.lt.s32.totalorder %v1265, 8
        %vm1272 = vcmp.lt.s32.totalorder %v1266, 8
        %vm1273 = vmand %vm1267, %vm1270
        %vm1274 = vmand %vm1268, %vm1271
        %vm1275 = vmand %vm1269, %vm1272
        %s1276 = sld [smem:[#allocation3 + %s1263]]
        %s1277 = sadd.s32 %s1276, 32
        %v1278 = vstv %s1277
        %v1279 = vadd.s32 %v1278, %v1264
        %v1280 = vadd.s32 %v1278, %v659
        %v1281 = vadd.s32 %v1278, %v1265
        %v1282 = vadd.s32 %v1278, %v1266
        %v1283 = vsel %vm1273, %v1279, %v1249
        %v1284 = vsel %vm1239, %v1280, %v1250
        %v1285 = vsel %vm1274, %v1281, %v1251
        %v1286 = vsel %vm1275, %v1282, %v1252
        %s1287 = sld [smem:[#allocation4 + %s1263]]
        %v1288 = vstv %s1287
        %vm1289 = vcmp.lt.s32.totalorder %v1264, %v1288
        %vm1290 = vcmp.lt.s32.totalorder %v659, %v1288
        %vm1291 = vcmp.lt.s32.totalorder %v1265, %v1288
        %vm1292 = vcmp.lt.s32.totalorder %v1266, %v1288
        %vm1293 = vmand %vm1273, %vm1289
        %vm1294 = vmand %vm1239, %vm1290
        %vm1295 = vmand %vm1274, %vm1291
        %vm1296 = vmand %vm1275, %vm1292
        %vm1297 = vmor %vm1259, %vm1293
        %vm1298 = vmor %vm1260, %vm1294
        %vm1299 = vmor %vm1261, %vm1295
        %vm1300 = vmor %vm1262, %vm1296
        %s1301 = sadd.s32 %s1230, 2
        %v1302 = vsub.s32 %v659, 16
        %v1303 = vsub.s32 %v660, 16
        %v1304 = vsub.s32 %v662, 16
        %vm1305 = vcmp.ge.s32.totalorder %v1302, 0
        %vm1306 = vcmp.ge.s32.totalorder %v1303, 0
        %vm1307 = vcmp.ge.s32.totalorder %v1304, 0
        %vm1308 = vcmp.lt.s32.totalorder %v1302, 8
        %vm1309 = vcmp.lt.s32.totalorder %v1303, 8
        %vm1310 = vcmp.lt.s32.totalorder %v1304, 8
        %vm1311 = vmand %vm1305, %vm1308
        %vm1312 = vmand %vm1306, %vm1309
        %vm1313 = vmand %vm1307, %vm1310
        %s1314 = sld [smem:[#allocation3 + %s1301]]
        %s1315 = sadd.s32 %s1314, 64
        %v1316 = vstv %s1315
        %v1317 = vadd.s32 %v1316, %v1302
        %v1318 = vadd.s32 %v1316, %v1303
        %v1319 = vadd.s32 %v1316, %v659
        %v1320 = vadd.s32 %v1316, %v1304
        %v1321 = vsel %vm1311, %v1317, %v1283
        %v1322 = vsel %vm1312, %v1318, %v1284
        %v1323 = vsel %vm1239, %v1319, %v1285
        %v1324 = vsel %vm1313, %v1320, %v1286
        %s1325 = sld [smem:[#allocation4 + %s1301]]
        %v1326 = vstv %s1325
        %vm1327 = vcmp.lt.s32.totalorder %v1302, %v1326
        %vm1328 = vcmp.lt.s32.totalorder %v1303, %v1326
        %vm1329 = vcmp.lt.s32.totalorder %v659, %v1326
        %vm1330 = vcmp.lt.s32.totalorder %v1304, %v1326
        %vm1331 = vmand %vm1311, %vm1327
        %vm1332 = vmand %vm1312, %vm1328
        %vm1333 = vmand %vm1239, %vm1329
        %vm1334 = vmand %vm1313, %vm1330
        %vm1335 = vmor %vm1297, %vm1331
        %vm1336 = vmor %vm1298, %vm1332
        %vm1337 = vmor %vm1299, %vm1333
        %vm1338 = vmor %vm1300, %vm1334
        %s1339 = sadd.s32 %s1230, 3
        %v1340 = vsub.s32 %v659, 24
        %v1341 = vsub.s32 %v660, 24
        %v1342 = vsub.s32 %v661, 24
        %vm1343 = vcmp.ge.s32.totalorder %v1340, 0
        %vm1344 = vcmp.ge.s32.totalorder %v1341, 0
        %vm1345 = vcmp.ge.s32.totalorder %v1342, 0
        %vm1346 = vcmp.lt.s32.totalorder %v1340, 8
        %vm1347 = vcmp.lt.s32.totalorder %v1341, 8
        %vm1348 = vcmp.lt.s32.totalorder %v1342, 8
        %vm1349 = vmand %vm1343, %vm1346
        %vm1350 = vmand %vm1344, %vm1347
        %vm1351 = vmand %vm1345, %vm1348
        %s1352 = sld [smem:[#allocation3 + %s1339]]
        %s1353 = sadd.s32 %s1352, 96
        %v1354 = vstv %s1353
        %v1355 = vadd.s32 %v1354, %v1340
        %v1356 = vadd.s32 %v1354, %v1341
        %v1357 = vadd.s32 %v1354, %v1342
        %v1358 = vadd.s32 %v1354, %v659
        %v1359 = vsel %vm1349, %v1355, %v1321
        %v1360 = vsel %vm1350, %v1356, %v1322
        %v1361 = vsel %vm1351, %v1357, %v1323
        %v1362 = vsel %vm1239, %v1358, %v1324
        %s1363 = sld [smem:[#allocation4 + %s1339]]
        %v1364 = vstv %s1363
        %vm1365 = vcmp.lt.s32.totalorder %v1340, %v1364
        %vm1366 = vcmp.lt.s32.totalorder %v1341, %v1364
        %vm1367 = vcmp.lt.s32.totalorder %v1342, %v1364
        %vm1368 = vcmp.lt.s32.totalorder %v659, %v1364
        %vm1369 = vmand %vm1349, %vm1365
        %vm1370 = vmand %vm1350, %vm1366
        %vm1371 = vmand %vm1351, %vm1367
        %vm1372 = vmand %vm1239, %vm1368
        %vm1373 = vmor %vm1335, %vm1369
        %vm1374 = vmor %vm1336, %vm1370
        %vm1375 = vmor %vm1337, %vm1371
        %vm1376 = vmor %vm1338, %vm1372
        %vm1377 = vcmp.eq.s32.totalorder %v676, %v1359
        %vm1378 = vcmp.eq.s32.totalorder %v676, %v1360
        %vm1379 = vcmp.eq.s32.totalorder %v676, %v1361
        %vm1380 = vcmp.eq.s32.totalorder %v676, %v1362
        %v1381 = vsel %vm1373, 1, 0
        %v1382 = vsel %vm1374, 1, 0
        %v1383 = vsel %vm1375, 1, 0
        %v1384 = vsel %vm1376, 1, 0
        %vm1385 = vcmp.eq.s32.totalorder %v1381, 1
        %vm1386 = vcmp.eq.s32.totalorder %v1382, 1
        %vm1387 = vcmp.eq.s32.totalorder %v1383, 1
        %vm1388 = vcmp.eq.s32.totalorder %v1384, 1
        %vm1389 = vmand %vm1377, %vm1385
        %vm1390 = vmand %vm1378, %vm1386
        %vm1391 = vmand %vm1379, %vm1387
        %vm1392 = vmand %vm1380, %vm1388
        %v1393 = vsel %vm1389, 1, 0
        %v1394 = vsel %vm1390, 1, 0
        %v1395 = vsel %vm1391, 1, 0
        %v1396 = vsel %vm1392, 1, 0
        %v1397 = vcvt.s32.f32 %v1393
        %v1398 = vcvt.s32.f32 %v1394
        %v1399 = vcvt.s32.f32 %v1395
        %v1400 = vcvt.s32.f32 %v1396
        %1401 = vmatprep.subr.mxu0 0.0
        %1402 = vmatpush1.msra.mxu0 %v1214
        %1403 = vmatprep.subr.mxu0 0.0
        %1404 = vmatpush1.msra.mxu0 %v1215
        %1405 = vmatprep.subr.mxu0 0.0
        %1406 = vmatpush1.msra.mxu0 %v1216
        %1407 = vmatprep.subr.mxu0 0.0
        %1408 = vmatpush1.msra.mxu0 %v1217
        %1409 = vmatprep.subr.mxu0 0.0
        %1410 = vmatpush1.msra.mxu0 %v1218
        %1411 = vmatprep.subr.mxu0 0.0
        %1412 = vmatpush1.msra.mxu0 %v1219
        %1413 = vmatprep.subr.mxu0 0.0
        %1414 = vmatpush1.msra.mxu0 %v1220
        %1415 = vmatprep.subr.mxu0 0.0
        %1416 = vmatpush1.msra.mxu0 %v1221
        %1417 = vmatprep.subr.mxu0 0.0
        %1418 = vmatpush1.msra.mxu0 %v1222
        %1419 = vmatprep.subr.mxu0 0.0
        %1420 = vmatpush1.msra.mxu0 %v1223
        %1421 = vmatprep.subr.mxu0 0.0
        %1422 = vmatpush1.msra.mxu0 %v1224
        %1423 = vmatprep.subr.mxu0 0.0
        %1424 = vmatpush1.msra.mxu0 %v1225
        %1425 = vmatprep.subr.mxu0 0.0
        %1426 = vmatpush1.msra.mxu0 %v1226
        %1427 = vmatprep.subr.mxu0 0.0
        %1428 = vmatpush1.msra.mxu0 %v1227
        %1429 = vmatprep.subr.mxu0 0.0
        %1430 = vmatpush1.msra.mxu0 %v1228
        %1431 = vmatprep.subr.mxu0 0.0
        %1432 = vmatpush1.msra.mxu0 %v1229
        %1433 = vmatprep.subr.mxu0 0.0
        %1434 = vmatpush1.msra.mxu0 0.0
        %1435 = vmatprep.subr.mxu0 0.0
        %1436 = vmatpush1.msra.mxu0 0.0
        %1437 = vmatprep.subr.mxu0 0.0
        %1438 = vmatpush1.msra.mxu0 0.0
        %1439 = vmatprep.subr.mxu0 0.0
        %1440 = vmatpush1.msra.mxu0 0.0
        %1441 = vmatprep.subr.mxu0 0.0
        %1442 = vmatpush1.msra.mxu0 0.0
        %1443 = vmatprep.subr.mxu0 0.0
        %1444 = vmatpush1.msra.mxu0 0.0
        %1445 = vmatprep.subr.mxu0 0.0
        %1446 = vmatpush1.msra.mxu0 0.0
        %1447 = vmatprep.subr.mxu0 0.0
        %1448 = vmatpush1.msra.mxu0 0.0
        %1449 = vmatprep.subr.mxu0 0.0
        %1450 = vmatpush1.msra.mxu0 0.0
        %1451 = vmatprep.subr.mxu0 0.0
        %1452 = vmatpush1.msra.mxu0 0.0
        %1453 = vmatprep.subr.mxu0 0.0
        %1454 = vmatpush1.msra.mxu0 0.0
        %1455 = vmatprep.subr.mxu0 0.0
        %1456 = vmatpush1.msra.mxu0 0.0
        %1457 = vmatprep.subr.mxu0 0.0
        %1458 = vmatpush1.msra.mxu0 0.0
        %1459 = vmatprep.subr.mxu0 0.0
        %1460 = vmatpush1.msra.mxu0 0.0
        %1461 = vmatprep.subr.mxu0 0.0
        %1462 = vmatpush1.msra.mxu0 0.0
        %1463 = vmatprep.subr.mxu0 0.0
        %1464 = vmatpush1.msra.mxu0 0.0
        %1465 = vmatprep.mubr.f32.mxu0 0.0
        %1466 = vmatmul.mubr.f32.gmra.mrb[0].mxu0 %v1397
        %v1467 = vpop.f32.mrb[0].mxu0
        %v1468 = vadd.f32 0.0, %v1467
        %v1469 = vpop.f32.mrb[0].mxu0
        %1470 = vmatprep.mubr.f32.mxu0 0.0
        %1471 = vmatmul.mubr.f32.gmra.mrb[0].mxu0 %v1398
        %v1472 = vpop.f32.mrb[0].mxu0
        %v1473 = vadd.f32 0.0, %v1472
        %v1474 = vpop.f32.mrb[0].mxu0
        %1475 = vmatprep.mubr.f32.mxu0 0.0
        %1476 = vmatmul.mubr.f32.gmra.mrb[0].mxu0 %v1399
        %v1477 = vpop.f32.mrb[0].mxu0
        %v1478 = vadd.f32 0.0, %v1477
        %v1479 = vpop.f32.mrb[0].mxu0
        %1480 = vmatprep.mubr.f32.mxu0 0.0
        %1481 = vmatmul.mubr.f32.gmra.mrb[0].mxu0 %v1400
        %v1482 = vpop.f32.mrb[0].mxu0
        %v1483 = vadd.f32 0.0, %v1482
        %v1484 = vpop.f32.mrb[0].mxu0
        %1485 = vdwg.mxu0
        %1486 = vst [vmem:[%s259] sm:$0xff] %v1468
        %1487 = vst [vmem:[%s259 + $0x8] sm:$0xff] %v1473
        %1488 = vst [vmem:[%s259 + $0x10] sm:$0xff] %v1478
        %1489 = vst [vmem:[%s259 + $0x18] sm:$0xff] %v1483
        %s1490 = sand.u32 %s159, 1
        %s1491 = scalar_lea.sflag [#allocation6], %s1490
        %s1492 = sand.u32 %s159, 1
        %s1493 = smul.addr %s1492, 32
        %s1494 = scalar_lea.vmem [#allocation5], %s1493
        // Predicated region
        $region41: #{nav_gcm_forward.1} parent=39 // pred_check
          %p1495 = pneg %p169
        $region42: #{nav_gcm_forward.1} parent=39 // pred_check_branch
          %1497 = sbr.rel (%p1495) target = $region44
        $region43: #{nav_gcm_forward.1} parent=39 // pred_region
          %s1498 = smul.u32 4, %s31
          %s1500 = ssub.s32 512, 512
          %1501 = vsyncadd %s1491, %s1500
          %s1502 = smul.addr %s1498, 128
          %s1503 = scalar_lea.hbm %s7, %s1502
          %s1504 = sshll.u32 %s1494, 4
          %s1505 = int_to_ptr.vmem [resolvable:$true] %s1504
          %1510 = dma.vmem_to_hbm [thread:$0]  %s1505, 512, %s1503, %s1491, 128, 128, 8
        $region44: #{nav_gcm_forward.1} parent=39 // pred_fallthru
          _
      $region40: #{nav_gcm_forward.1} parent=5 // pred_fallthru
        _
      %p1511 = scmp.le.s32.totalorder 2, %s26
      // Predicated region
      $region45: #{nav_gcm_forward.1} parent=5 // pred_check
        %p1512 = pneg %p1511
      $region46: #{nav_gcm_forward.1} parent=5 // pred_check_branch
        %1514 = sbr.rel (%p1512) target = $region48
      $region47: #{nav_gcm_forward.1} parent=5 // pred_region
        %s1515 = ssub.s32 %s26, 2
        // Predicated region
        $region49: #{nav_gcm_forward.1} parent=47 // pred_check
          %p1516 = pneg %p175
        $region50: #{nav_gcm_forward.1} parent=47 // pred_check_branch
          %1518 = sbr.rel (%p1516) target = $region52
        $region51: #{nav_gcm_forward.1} parent=47 // pred_region
          %s1519 = sand.u32 %s160, 1
          %s1520 = scalar_lea.sflag [#allocation6], %s1519
          %s1521 = sand.u32 %s160, 1
          %s1522 = smul.addr %s1521, 32
          %s1523 = scalar_lea.vmem [#allocation5], %s1522
          %1524 = dma.done %s1520, 512
        $region52: #{nav_gcm_forward.1} parent=47 // pred_fallthru
          _
      $region48: #{nav_gcm_forward.1} parent=5 // pred_fallthru
        _
    $region6: #{nav_gcm_forward.1} parent=1 // loop_footer
      %s30 = sadd.s32 1, %s26
    $region7: #{nav_gcm_forward.1} parent=1 // loop_footer_branch
      %25 = sbr.rel target = $region3
    $region8: #{nav_gcm_forward.1} parent=1 // loop_exit
      _
    %1525 = vsyncpa [#allocation6], 1
    %s1526 = scalar_lea.sflag [#allocation6], 1
    %1527 = vsyncpa %s1526, 1

</llo_original>
